<compile_context>
chip_gen: v7x
topology: tpu7x:2x2x1
jax: 0.10.0
libtpu: 0.0.40
codegen_flags: <defaults>
</compile_context>

<pallas_src>
import math

import numpy as np
import jax
import jax.numpy as jnp
from jax.experimental import pallas as pl
from jax.experimental.pallas import tpu as pltpu


def make_transformer_block_call(batch, seq, dim, n_heads, hidden, eps):
    head_dim = dim // n_heads
    hd2 = head_dim // 2
    half = dim // 2
    T = batch * seq
    f32 = jnp.float32
    bf16 = jnp.bfloat16

    def kernel(x_ref, cos2_ref, sin2_ref, wqkv_ref, wo_ref, w13_ref, w2_ref,
               out_ref, keys_ref, values_ref):
        x = x_ref[...]                       # (S, D) f32
        cos2 = cos2_ref[...]                 # (S, D) f32 = [cos | cos]
        sin2 = sin2_ref[...]                 # (S, D) f32 = [-sin | sin]

        def rmsnorm(v):                      # norm scale folded into weights
            ms = jnp.mean(v * v, axis=-1, keepdims=True)
            return v * jax.lax.rsqrt(ms + eps)

        # ---- attention branch --------------------------------------------
        hb = rmsnorm(x).astype(bf16)         # single bf16 cast, reused by QKV
        qkv = jnp.dot(hb, wqkv_ref[...], preferred_element_type=f32)  # (S,3D)
        xq = qkv[:, :dim]                    # [re|im] cols, pre-scaled 1/sqrt(hd)
        xk = qkv[:, dim:2 * dim]             # [re|im] cols
        xv = qkv[:, 2 * dim:]                # original column layout

        # full-width RoPE: roll by D/2 swaps the re/im halves, so the rotation
        # is two full-vreg FMAs (VPU) + one lane-roll (XLU).
        q_rot = xq * cos2 + pltpu.roll(xq, shift=half, axis=1) * sin2
        k_rot = xk * cos2 + pltpu.roll(xk, shift=half, axis=1) * sin2

        keys_ref[...] = k_rot                # single lane-dense store
        values_ref[...] = xv

        # per-head tiles (NH, S, hd); q/k heads carry [re(hd/2) | im(hd/2)]
        def heads_ri(v):                     # (S, D) [re|im] -> (NH, S, hd)
            return jnp.stack(
                [jnp.concatenate(
                    [v[:, h * hd2:(h + 1) * hd2],
                     v[:, half + h * hd2:half + (h + 1) * hd2]], axis=-1)
                 for h in range(n_heads)], axis=0)

        def heads(v):                        # (S, NH*hd) -> (NH, S, hd)
            return jnp.stack(
                [v[:, h * head_dim:(h + 1) * head_dim]
                 for h in range(n_heads)], axis=0)

        qh = heads_ri(q_rot).astype(bf16)    # (NH, S, hd)
        kh = heads_ri(k_rot).astype(bf16)
        vh = heads(xv).astype(bf16)

        # ONE batched score matmul, contraction = head_dim (re & im fused)
        s = jnp.einsum('hqc,hkc->hqk', qh, kh, preferred_element_type=f32)

        # causal mask generated in-kernel (no (T,T) bias input)
        rows = jax.lax.broadcasted_iota(jnp.int32, (seq, seq), 0)
        cols = jax.lax.broadcasted_iota(jnp.int32, (seq, seq), 1)
        s = jnp.where((rows >= cols)[None, :, :], s, -1e30)

        m = jnp.max(s, axis=-1, keepdims=True)
        p = jnp.exp(s - m)
        denom = jnp.sum(p, axis=-1, keepdims=True)
        # EUP approx reciprocal: ~1e-3 relative softmax error (documented).
        p = p * pl.reciprocal(denom, approx=True)

        oh = jnp.einsum('hqk,hkd->hqd', p.astype(bf16), vh,
                        preferred_element_type=f32)          # (NH, S, hd)
        # head recombination fused into one full 128-deep output projection
        o_cat = jnp.concatenate([oh[h] for h in range(n_heads)], axis=-1)
        attn_out = jnp.dot(o_cat.astype(bf16), wo_ref[...],
                           preferred_element_type=f32)       # (S, D)

        h1 = x + attn_out

        # ---- SwiGLU feed-forward branch ------------------------------------
        gb = rmsnorm(h1).astype(bf16)
        u = jnp.dot(gb, w13_ref[...], preferred_element_type=f32)  # (S, 2H)
        u1 = u[:, :hidden]
        u3 = u[:, hidden:]
        ff = jnp.dot((jax.nn.silu(u1) * u3).astype(bf16), w2_ref[...],
                     preferred_element_type=f32)

        out_ref[...] = h1 + ff

    act = lambda b: (b, 0)       # per-batch activation block
    const = lambda b: (0, 0)     # resident operand (weights / cos / sin)

    return pl.pallas_call(
        kernel,
        grid=(batch,),
        in_specs=[
            pl.BlockSpec((seq, dim), act),              # x (folded rows)
            pl.BlockSpec((seq, dim), const),            # cos2
            pl.BlockSpec((seq, dim), const),            # sin2
            pl.BlockSpec((dim, 3 * dim), const),        # fused wq|wk|wv
            pl.BlockSpec((dim, dim), const),            # wo
            pl.BlockSpec((dim, 2 * hidden), const),     # fused w1|w3
            pl.BlockSpec((hidden, dim), const),         # w2
        ],
        out_specs=(
            pl.BlockSpec((seq, dim), act),              # block output
            pl.BlockSpec((seq, dim), act),              # post-RoPE keys [re|im]
            pl.BlockSpec((seq, dim), act),              # values
        ),
        out_shape=(
            jax.ShapeDtypeStruct((T, dim), f32),
            jax.ShapeDtypeStruct((T, dim), f32),
            jax.ShapeDtypeStruct((T, dim), f32),
        ),
        compiler_params=pltpu.CompilerParams(
            dimension_semantics=("parallel",)),
    )


def transformer_block_forward(x, cos, sin, params, n_heads, eps):
    """Pallas version of TransformerBlock.forward (cache=None, is_causal=True)."""
    B, S, D = x.shape
    hd = D // n_heads
    hd2 = hd // 2
    half = D // 2
    T = B * S
    hidden = params["w1"].shape[1]
    f32 = jnp.float32
    bf16 = jnp.bfloat16
    scale = 1.0 / math.sqrt(hd)

    # q/k weight columns reordered to [all real | all imag] (head-major inside
    # each half) so in-kernel RoPE is a single full-width roll + FMA.
    idx = np.arange(D).reshape(n_heads, hd2, 2)
    perm_cols = jnp.asarray(
        np.concatenate([idx[..., 0].reshape(-1), idx[..., 1].reshape(-1)]))

    attn_nw = params["attn_norm"].astype(f32)[:, None]
    ffn_nw = params["ffn_norm"].astype(f32)[:, None]

    # Fold norm scales (f32) and the 1/sqrt(head_dim) query scale into the
    # weights, then fuse QKV and W1|W3 column-wise; cast to bf16 last.
    wq_p = attn_nw * jnp.take(params["wq"], perm_cols, axis=1) * scale
    wk_p = attn_nw * jnp.take(params["wk"], perm_cols, axis=1)
    wv_p = attn_nw * params["wv"]
    wqkv = jnp.concatenate([wq_p, wk_p, wv_p], axis=1).astype(bf16)   # (D, 3D)
    wo = params["wo"].astype(bf16)                                     # (D, D)
    w13 = (ffn_nw * jnp.concatenate([params["w1"], params["w3"]],
                                    axis=1)).astype(bf16)              # (D, 2H)
    w2 = params["w2"].astype(bf16)                                     # (H, D)

    # cos/sin (S, hd//2) -> full-width (S, D) tables matching the [re|im] layout
    cos_h = jnp.tile(cos, (1, n_heads))                  # (S, D//2)
    sin_h = jnp.tile(sin, (1, n_heads))
    cos2 = jnp.concatenate([cos_h, cos_h], axis=1)       # (S, D)
    sin2 = jnp.concatenate([-sin_h, sin_h], axis=1)      # (S, D)

    call = make_transformer_block_call(B, S, D, n_heads, hidden, eps)
    out2d, keys2d, values2d = call(x.reshape(T, D), cos2, sin2, wqkv, wo, w13, w2)

    out = out2d.reshape(B, S, D)
    # Keys come back as [re | im] halves; re-interleave to the reference
    # (B, S, n_heads, head_dim) complex-pair layout outside the kernel.
    k_re = keys2d[:, :half].reshape(B, S, n_heads, hd2)
    k_im = keys2d[:, half:].reshape(B, S, n_heads, hd2)
    keys = jnp.stack([k_re, k_im], axis=-1).reshape(B, S, n_heads, hd)
    values = values2d.reshape(B, S, n_heads, hd)
    return out, (keys, values)


def reference_forward(x, cos, sin, params, n_heads, eps):
    """Pure-JAX (f32, HIGHEST precision) mirror of the PyTorch forward."""
    B, S, D = x.shape
    hd = D // n_heads
    hp = jax.lax.Precision.HIGHEST

    def rms(v, w):
        return v * jax.lax.rsqrt(jnp.mean(v * v, -1, keepdims=True) + eps) * w

    h = rms(x, params["attn_norm"])
    xq = jnp.dot(h, params["wq"], precision=hp).reshape(B, S, n_heads, hd)
    xk = jnp.dot(h, params["wk"], precision=hp).reshape(B, S, n_heads, hd)
    xv = jnp.dot(h, params["wv"], precision=hp).reshape(B, S, n_heads, hd)

    def rope(v):
        vr = v.reshape(B, S, n_heads, hd // 2, 2)
        re, im = vr[..., 0], vr[..., 1]
        c = cos[None, :, None, :]
        s = sin[None, :, None, :]
        return jnp.stack([re * c - im * s, re * s + im * c],
                         axis=-1).reshape(B, S, n_heads, hd)

    xq, xk = rope(xq), rope(xk)
    scale = 1.0 / math.sqrt(hd)
    scores = jnp.einsum("bqhd,bkhd->bhqk", xq, xk, precision=hp) * scale
    mask = jnp.tril(jnp.ones((S, S), bool))
    scores = jnp.where(mask, scores, -1e30)
    p = jax.nn.softmax(scores, axis=-1)
    o = jnp.einsum("bhqk,bkhd->bqhd", p, xv, precision=hp).reshape(B, S, D)
    h1 = x + jnp.dot(o, params["wo"], precision=hp)
    g = rms(h1, params["ffn_norm"])
    ff = jnp.dot(jax.nn.silu(jnp.dot(g, params["w1"], precision=hp))
                 * jnp.dot(g, params["w3"], precision=hp),
                 params["w2"], precision=hp)
    return h1 + ff, (xk, xv)


if __name__ == "__main__":
    # Toy ModelArgs: dim=128 (lane-dense), n_heads=4 (head_dim=32),
    # multiple_of=128, norm_eps=1e-4 -> ffn hidden = 384.
    B, S, D, NH = 2, 8, 128, 4
    HD = D // NH
    MULTIPLE_OF = 128
    EPS = 1e-4
    hidden = int(2 * (4 * D) / 3)
    hidden = MULTIPLE_OF * ((hidden + MULTIPLE_OF - 1) // MULTIPLE_OF)  # 384

    key = jax.random.PRNGKey(0)
    ks = jax.random.split(key, 10)
    x = jax.random.normal(ks[0], (B, S, D), jnp.float32) * 0.5
    params = {
        "wq": jax.random.normal(ks[1], (D, D), jnp.float32) * 0.05,
        "wk": jax.random.normal(ks[2], (D, D), jnp.float32) * 0.05,
        "wv": jax.random.normal(ks[3], (D, D), jnp.float32) * 0.05,
        "wo": jax.random.normal(ks[4], (D, D), jnp.float32) * 0.05,
        "w1": jax.random.normal(ks[5], (D, hidden), jnp.float32) * 0.05,
        "w3": jax.random.normal(ks[6], (D, hidden), jnp.float32) * 0.05,
        "w2": jax.random.normal(ks[7], (hidden, D), jnp.float32) * 0.05,
        # RMSNorm init is ones; perturb slightly so the norm-weight folding
        # path is actually exercised by the correctness check.
        "attn_norm": 1.0 + 0.1 * jax.random.normal(ks[8], (D,), jnp.float32),
        "ffn_norm": 1.0 + 0.1 * jax.random.normal(ks[9], (D,), jnp.float32),
    }

    # freqs_cis (complex in torch) represented by cos/sin, shape (S, HD//2).
    inv_freq = 1.0 / (10000.0 ** (np.arange(0, HD, 2, dtype=np.float32) / HD))
    ang = np.outer(np.arange(S, dtype=np.float32), inv_freq)
    cos = jnp.asarray(np.cos(ang), jnp.float32)
    sin = jnp.asarray(np.sin(ang), jnp.float32)

    out, (keys, values) = transformer_block_forward(x, cos, sin, params, NH, EPS)
    jax.block_until_ready((out, keys, values))

    ref_out, (ref_k, ref_v) = reference_forward(x, cos, sin, params, NH, EPS)
    # bf16 MXU operands (f32 accumulation) + approx softmax reciprocal vs an
    # all-f32 HIGHEST-precision reference: tolerances sized accordingly.
    assert float(jnp.max(jnp.abs(out - ref_out))) < 6e-2, "output mismatch"
    assert float(jnp.max(jnp.abs(keys - ref_k))) < 2e-2, "keys mismatch"
    assert float(jnp.max(jnp.abs(values - ref_v))) < 2e-2, "values mismatch"

    print("KERNEL_OK")
</pallas_src>

<mosaic_0001>
module attributes {stable_mosaic.version = 11 : i64} {
  func.func @kernel(%arg0: i32, %arg1: memref<8x128xf32, #tpu.memory_space<vmem>>, %arg2: memref<8x128xf32, #tpu.memory_space<vmem>>, %arg3: memref<8x128xf32, #tpu.memory_space<vmem>>, %arg4: memref<128x384xbf16, #tpu.memory_space<vmem>>, %arg5: memref<128x128xbf16, #tpu.memory_space<vmem>>, %arg6: memref<128x768xbf16, #tpu.memory_space<vmem>>, %arg7: memref<384x128xbf16, #tpu.memory_space<vmem>>, %arg8: memref<8x128xf32, #tpu.memory_space<vmem>>, %arg9: memref<8x128xf32, #tpu.memory_space<vmem>>, %arg10: memref<8x128xf32, #tpu.memory_space<vmem>>) attributes {dimension_semantics = [#tpu.dimension_semantics<parallel>], iteration_bounds = array<i64: 2>, scalar_prefetch = 0 : i64, scratch_operands = 0 : i64, tpu.core_type = #tpu.core_type<tc>, window_params = [{transform_indices = @transform_0, window_bounds = array<i64: 8, 128>}, {pipeline_mode = #tpu.pipeline_mode<synchronous>, transform_indices = @transform_1, window_bounds = array<i64: 8, 128>}, {pipeline_mode = #tpu.pipeline_mode<synchronous>, transform_indices = @transform_2, window_bounds = array<i64: 8, 128>}, {pipeline_mode = #tpu.pipeline_mode<synchronous>, transform_indices = @transform_3, window_bounds = array<i64: 128, 384>}, {pipeline_mode = #tpu.pipeline_mode<synchronous>, transform_indices = @transform_4, window_bounds = array<i64: 128, 128>}, {pipeline_mode = #tpu.pipeline_mode<synchronous>, transform_indices = @transform_5, window_bounds = array<i64: 128, 768>}, {pipeline_mode = #tpu.pipeline_mode<synchronous>, transform_indices = @transform_6, window_bounds = array<i64: 384, 128>}, {transform_indices = @transform_7, window_bounds = array<i64: 8, 128>}, {transform_indices = @transform_8, window_bounds = array<i64: 8, 128>}, {transform_indices = @transform_9, window_bounds = array<i64: 8, 128>}]} {
    %c0 = arith.constant 0 : index
    %c0_0 = arith.constant 0 : index
    %0 = vector.load %arg1[%c0, %c0_0] : memref<8x128xf32, #tpu.memory_space<vmem>>, vector<8x128xf32>
    %c0_1 = arith.constant 0 : index
    %c0_2 = arith.constant 0 : index
    %1 = vector.load %arg2[%c0_1, %c0_2] : memref<8x128xf32, #tpu.memory_space<vmem>>, vector<8x128xf32>
    %c0_3 = arith.constant 0 : index
    %c0_4 = arith.constant 0 : index
    %2 = vector.load %arg3[%c0_3, %c0_4] : memref<8x128xf32, #tpu.memory_space<vmem>>, vector<8x128xf32>
    %3 = arith.mulf %0, %0 : vector<8x128xf32>
    %cst = arith.constant dense<0.000000e+00> : vector<8xf32>
    %4 = vector.multi_reduction <add>, %3, %cst [1] : vector<8x128xf32> to vector<8xf32>
    %5 = vector.shape_cast %4 : vector<8xf32> to vector<8x1xf32>
    %cst_5 = arith.constant 1.280000e+02 : f32
    %6 = vector.broadcast %cst_5 : f32 to vector<8x1xf32>
    %7 = arith.divf %5, %6 : vector<8x1xf32>
    %cst_6 = arith.constant 9.99999974E-5 : f32
    %8 = vector.broadcast %cst_6 : f32 to vector<8x1xf32>
    %9 = arith.addf %7, %8 : vector<8x1xf32>
    %10 = math.rsqrt %9 : vector<8x1xf32>
    %11 = vector.broadcast %10 : vector<8x1xf32> to vector<8x128xf32>
    %12 = arith.mulf %0, %11 : vector<8x128xf32>
    %13 = arith.truncf %12 : vector<8x128xf32> to vector<8x128xbf16>
    %c0_7 = arith.constant 0 : index
    %c0_8 = arith.constant 0 : index
    %14 = vector.load %arg4[%c0_7, %c0_8] : memref<128x384xbf16, #tpu.memory_space<vmem>>, vector<128x384xbf16>
    %cst_9 = arith.constant dense<0.000000e+00> : vector<8x384xf32>
    %15 = tpu.matmul %13, %14, %cst_9 {dimension_numbers = #tpu.dot_dimension_numbers<[1], [0], [0], [1], [0, 0, 1, 1], [], []>} : vector<8x128xbf16>, vector<128x384xbf16>, vector<8x384xf32> -> vector<8x384xf32>
    %16 = vector.extract_strided_slice %15 {offsets = [0, 0], sizes = [8, 128], strides = [1, 1]} : vector<8x384xf32> to vector<8x128xf32>
    %17 = vector.extract_strided_slice %15 {offsets = [0, 128], sizes = [8, 128], strides = [1, 1]} : vector<8x384xf32> to vector<8x128xf32>
    %18 = vector.extract_strided_slice %15 {offsets = [0, 256], sizes = [8, 128], strides = [1, 1]} : vector<8x384xf32> to vector<8x128xf32>
    %19 = arith.mulf %16, %1 : vector<8x128xf32>
    %c64_i32 = arith.constant 64 : i32
    %20 = tpu.dynamic_rotate %16 by %c64_i32 dim 1 : vector<8x128xf32>, i32 -> vector<8x128xf32>
    %21 = arith.mulf %20, %2 : vector<8x128xf32>
    %22 = arith.addf %19, %21 : vector<8x128xf32>
    %23 = arith.mulf %17, %1 : vector<8x128xf32>
    %c64_i32_10 = arith.constant 64 : i32
    %24 = tpu.dynamic_rotate %17 by %c64_i32_10 dim 1 : vector<8x128xf32>, i32 -> vector<8x128xf32>
    %25 = arith.mulf %24, %2 : vector<8x128xf32>
    %26 = arith.addf %23, %25 : vector<8x128xf32>
    %c0_11 = arith.constant 0 : index
    %c0_12 = arith.constant 0 : index
    %27 = vector.load %arg9[%c0_11, %c0_12] : memref<8x128xf32, #tpu.memory_space<vmem>>, vector<8x128xf32>
    tpu.vector_store %arg9[%c0_11, %c0_12], %26 {strides = array<i32>} : memref<8x128xf32, #tpu.memory_space<vmem>>, vector<8x128xf32>,
    %c0_13 = arith.constant 0 : index
    %c0_14 = arith.constant 0 : index
    %28 = vector.load %arg10[%c0_13, %c0_14] : memref<8x128xf32, #tpu.memory_space<vmem>>, vector<8x128xf32>
    tpu.vector_store %arg10[%c0_13, %c0_14], %18 {strides = array<i32>} : memref<8x128xf32, #tpu.memory_space<vmem>>, vector<8x128xf32>,
    %29 = vector.extract_strided_slice %22 {offsets = [0, 0], sizes = [8, 16], strides = [1, 1]} : vector<8x128xf32> to vector<8x16xf32>
    %30 = vector.extract_strided_slice %22 {offsets = [0, 64], sizes = [8, 16], strides = [1, 1]} : vector<8x128xf32> to vector<8x16xf32>
    %31 = tpu.concatenate %29, %30 in 1 : vector<8x16xf32>, vector<8x16xf32> -> vector<8x32xf32>
    %32 = vector.extract_strided_slice %22 {offsets = [0, 16], sizes = [8, 16], strides = [1, 1]} : vector<8x128xf32> to vector<8x16xf32>
    %33 = vector.extract_strided_slice %22 {offsets = [0, 80], sizes = [8, 16], strides = [1, 1]} : vector<8x128xf32> to vector<8x16xf32>
    %34 = tpu.concatenate %32, %33 in 1 : vector<8x16xf32>, vector<8x16xf32> -> vector<8x32xf32>
    %35 = vector.extract_strided_slice %22 {offsets = [0, 32], sizes = [8, 16], strides = [1, 1]} : vector<8x128xf32> to vector<8x16xf32>
    %36 = vector.extract_strided_slice %22 {offsets = [0, 96], sizes = [8, 16], strides = [1, 1]} : vector<8x128xf32> to vector<8x16xf32>
    %37 = tpu.concatenate %35, %36 in 1 : vector<8x16xf32>, vector<8x16xf32> -> vector<8x32xf32>
    %38 = vector.extract_strided_slice %22 {offsets = [0, 48], sizes = [8, 16], strides = [1, 1]} : vector<8x128xf32> to vector<8x16xf32>
    %39 = vector.extract_strided_slice %22 {offsets = [0, 112], sizes = [8, 16], strides = [1, 1]} : vector<8x128xf32> to vector<8x16xf32>
    %40 = tpu.concatenate %38, %39 in 1 : vector<8x16xf32>, vector<8x16xf32> -> vector<8x32xf32>
    %41 = vector.shape_cast %31 : vector<8x32xf32> to vector<1x8x32xf32>
    %42 = vector.shape_cast %34 : vector<8x32xf32> to vector<1x8x32xf32>
    %43 = vector.shape_cast %37 : vector<8x32xf32> to vector<1x8x32xf32>
    %44 = vector.shape_cast %40 : vector<8x32xf32> to vector<1x8x32xf32>
    %45 = tpu.concatenate %41, %42, %43, %44 in 0 : vector<1x8x32xf32>, vector<1x8x32xf32>, vector<1x8x32xf32>, vector<1x8x32xf32> -> vector<4x8x32xf32>
    %46 = arith.truncf %45 : vector<4x8x32xf32> to vector<4x8x32xbf16>
    %47 = vector.extract_strided_slice %26 {offsets = [0, 0], sizes = [8, 16], strides = [1, 1]} : vector<8x128xf32> to vector<8x16xf32>
    %48 = vector.extract_strided_slice %26 {offsets = [0, 64], sizes = [8, 16], strides = [1, 1]} : vector<8x128xf32> to vector<8x16xf32>
    %49 = tpu.concatenate %47, %48 in 1 : vector<8x16xf32>, vector<8x16xf32> -> vector<8x32xf32>
    %50 = vector.extract_strided_slice %26 {offsets = [0, 16], sizes = [8, 16], strides = [1, 1]} : vector<8x128xf32> to vector<8x16xf32>
    %51 = vector.extract_strided_slice %26 {offsets = [0, 80], sizes = [8, 16], strides = [1, 1]} : vector<8x128xf32> to vector<8x16xf32>
    %52 = tpu.concatenate %50, %51 in 1 : vector<8x16xf32>, vector<8x16xf32> -> vector<8x32xf32>
    %53 = vector.extract_strided_slice %26 {offsets = [0, 32], sizes = [8, 16], strides = [1, 1]} : vector<8x128xf32> to vector<8x16xf32>
    %54 = vector.extract_strided_slice %26 {offsets = [0, 96], sizes = [8, 16], strides = [1, 1]} : vector<8x128xf32> to vector<8x16xf32>
    %55 = tpu.concatenate %53, %54 in 1 : vector<8x16xf32>, vector<8x16xf32> -> vector<8x32xf32>
    %56 = vector.extract_strided_slice %26 {offsets = [0, 48], sizes = [8, 16], strides = [1, 1]} : vector<8x128xf32> to vector<8x16xf32>
    %57 = vector.extract_strided_slice %26 {offsets = [0, 112], sizes = [8, 16], strides = [1, 1]} : vector<8x128xf32> to vector<8x16xf32>
    %58 = tpu.concatenate %56, %57 in 1 : vector<8x16xf32>, vector<8x16xf32> -> vector<8x32xf32>
    %59 = vector.shape_cast %49 : vector<8x32xf32> to vector<1x8x32xf32>
    %60 = vector.shape_cast %52 : vector<8x32xf32> to vector<1x8x32xf32>
    %61 = vector.shape_cast %55 : vector<8x32xf32> to vector<1x8x32xf32>
    %62 = vector.shape_cast %58 : vector<8x32xf32> to vector<1x8x32xf32>
    %63 = tpu.concatenate %59, %60, %61, %62 in 0 : vector<1x8x32xf32>, vector<1x8x32xf32>, vector<1x8x32xf32>, vector<1x8x32xf32> -> vector<4x8x32xf32>
    %64 = arith.truncf %63 : vector<4x8x32xf32> to vector<4x8x32xbf16>
    %65 = vector.extract_strided_slice %18 {offsets = [0, 0], sizes = [8, 32], strides = [1, 1]} : vector<8x128xf32> to vector<8x32xf32>
    %66 = vector.extract_strided_slice %18 {offsets = [0, 32], sizes = [8, 32], strides = [1, 1]} : vector<8x128xf32> to vector<8x32xf32>
    %67 = vector.extract_strided_slice %18 {offsets = [0, 64], sizes = [8, 32], strides = [1, 1]} : vector<8x128xf32> to vector<8x32xf32>
    %68 = vector.extract_strided_slice %18 {offsets = [0, 96], sizes = [8, 32], strides = [1, 1]} : vector<8x128xf32> to vector<8x32xf32>
    %69 = vector.shape_cast %65 : vector<8x32xf32> to vector<1x8x32xf32>
    %70 = vector.shape_cast %66 : vector<8x32xf32> to vector<1x8x32xf32>
    %71 = vector.shape_cast %67 : vector<8x32xf32> to vector<1x8x32xf32>
    %72 = vector.shape_cast %68 : vector<8x32xf32> to vector<1x8x32xf32>
    %73 = tpu.concatenate %69, %70, %71, %72 in 0 : vector<1x8x32xf32>, vector<1x8x32xf32>, vector<1x8x32xf32>, vector<1x8x32xf32> -> vector<4x8x32xf32>
    %74 = arith.truncf %73 : vector<4x8x32xf32> to vector<4x8x32xbf16>
    "tpu.trace_start"() <{level = 10 : i32, message = "hqc,hkc->hqk"}> : () -> ()
    %cst_15 = arith.constant dense<0.000000e+00> : vector<4x8x8xf32>
    %75 = tpu.matmul %46, %64, %cst_15 {dimension_numbers = #tpu.dot_dimension_numbers<[2], [2], [1], [1], [0, 0, 0, 1, 1, 1], [0], [0]>} : vector<4x8x32xbf16>, vector<4x8x32xbf16>, vector<4x8x8xf32> -> vector<4x8x8xf32>
    "tpu.trace_stop"() : () -> ()
    %76 = tpu.iota {dimensions = array<i32: 0>} : vector<8x8xi32>
    %77 = tpu.iota {dimensions = array<i32: 1>} : vector<8x8xi32>
    %78 = arith.cmpi sge, %76, %77 : vector<8x8xi32>
    %79 = vector.shape_cast %78 : vector<8x8xi1> to vector<1x8x8xi1>
    %cst_16 = arith.constant -1.000000e+30 : f32
    %80 = vector.shape_cast %79 : vector<1x8x8xi1> to vector<1x8x8xi1>
    %81 = vector.broadcast %80 : vector<1x8x8xi1> to vector<4x8x8xi1>
    %82 = vector.broadcast %cst_16 : f32 to vector<4x8x8xf32>
    %83 = arith.select %81, %75, %82 : vector<4x8x8xi1>, vector<4x8x8xf32>
    %cst_17 = arith.constant dense<0xFF800000> : vector<4x8xf32>
    %84 = vector.multi_reduction <maximumf>, %83, %cst_17 [2] : vector<4x8x8xf32> to vector<4x8xf32>
    %85 = vector.shape_cast %84 : vector<4x8xf32> to vector<4x8x1xf32>
    %86 = vector.broadcast %85 : vector<4x8x1xf32> to vector<4x8x8xf32>
    %87 = arith.subf %83, %86 : vector<4x8x8xf32>
    %88 = math.exp %87 : vector<4x8x8xf32>
    %cst_18 = arith.constant dense<0.000000e+00> : vector<4x8xf32>
    %89 = vector.multi_reduction <add>, %88, %cst_18 [2] : vector<4x8x8xf32> to vector<4x8xf32>
    %90 = vector.shape_cast %89 : vector<4x8xf32> to vector<4x8x1xf32>
    %91 = tpu.reciprocal %90 {approx = true} : vector<4x8x1xf32> -> vector<4x8x1xf32>
    %92 = vector.broadcast %91 : vector<4x8x1xf32> to vector<4x8x8xf32>
    %93 = arith.mulf %88, %92 : vector<4x8x8xf32>
    %94 = arith.truncf %93 : vector<4x8x8xf32> to vector<4x8x8xbf16>
    "tpu.trace_start"() <{level = 10 : i32, message = "hqk,hkd->hqd"}> : () -> ()
    %cst_19 = arith.constant dense<0.000000e+00> : vector<4x8x32xf32>
    %95 = tpu.matmul %94, %74, %cst_19 {dimension_numbers = #tpu.dot_dimension_numbers<[2], [1], [1], [2], [0, 0, 0, 1, 1, 2], [0], [0]>} : vector<4x8x8xbf16>, vector<4x8x32xbf16>, vector<4x8x32xf32> -> vector<4x8x32xf32>
    "tpu.trace_stop"() : () -> ()
    %96 = vector.extract_strided_slice %95 {offsets = [0, 0, 0], sizes = [1, 8, 32], strides = [1, 1, 1]} : vector<4x8x32xf32> to vector<1x8x32xf32>
    %97 = vector.shape_cast %96 : vector<1x8x32xf32> to vector<8x32xf32>
    %98 = vector.extract_strided_slice %95 {offsets = [1, 0, 0], sizes = [1, 8, 32], strides = [1, 1, 1]} : vector<4x8x32xf32> to vector<1x8x32xf32>
    %99 = vector.shape_cast %98 : vector<1x8x32xf32> to vector<8x32xf32>
    %100 = vector.extract_strided_slice %95 {offsets = [2, 0, 0], sizes = [1, 8, 32], strides = [1, 1, 1]} : vector<4x8x32xf32> to vector<1x8x32xf32>
    %101 = vector.shape_cast %100 : vector<1x8x32xf32> to vector<8x32xf32>
    %102 = vector.extract_strided_slice %95 {offsets = [3, 0, 0], sizes = [1, 8, 32], strides = [1, 1, 1]} : vector<4x8x32xf32> to vector<1x8x32xf32>
    %103 = vector.shape_cast %102 : vector<1x8x32xf32> to vector<8x32xf32>
    %104 = tpu.concatenate %97, %99, %101, %103 in 1 : vector<8x32xf32>, vector<8x32xf32>, vector<8x32xf32>, vector<8x32xf32> -> vector<8x128xf32>
    %105 = arith.truncf %104 : vector<8x128xf32> to vector<8x128xbf16>
    %c0_20 = arith.constant 0 : index
    %c0_21 = arith.constant 0 : index
    %106 = vector.load %arg5[%c0_20, %c0_21] : memref<128x128xbf16, #tpu.memory_space<vmem>>, vector<128x128xbf16>
    %cst_22 = arith.constant dense<0.000000e+00> : vector<8x128xf32>
    %107 = tpu.matmul %105, %106, %cst_22 {dimension_numbers = #tpu.dot_dimension_numbers<[1], [0], [0], [1], [0, 0, 1, 1], [], []>} : vector<8x128xbf16>, vector<128x128xbf16>, vector<8x128xf32> -> vector<8x128xf32>
    %108 = arith.addf %0, %107 : vector<8x128xf32>
    %109 = arith.mulf %108, %108 : vector<8x128xf32>
    %cst_23 = arith.constant dense<0.000000e+00> : vector<8xf32>
    %110 = vector.multi_reduction <add>, %109, %cst_23 [1] : vector<8x128xf32> to vector<8xf32>
    %111 = vector.shape_cast %110 : vector<8xf32> to vector<8x1xf32>
    %cst_24 = arith.constant 1.280000e+02 : f32
    %112 = vector.broadcast %cst_24 : f32 to vector<8x1xf32>
    %113 = arith.divf %111, %112 : vector<8x1xf32>
    %cst_25 = arith.constant 9.99999974E-5 : f32
    %114 = vector.broadcast %cst_25 : f32 to vector<8x1xf32>
    %115 = arith.addf %113, %114 : vector<8x1xf32>
    %116 = math.rsqrt %115 : vector<8x1xf32>
    %117 = vector.broadcast %116 : vector<8x1xf32> to vector<8x128xf32>
    %118 = arith.mulf %108, %117 : vector<8x128xf32>
    %119 = arith.truncf %118 : vector<8x128xf32> to vector<8x128xbf16>
    %c0_26 = arith.constant 0 : index
    %c0_27 = arith.constant 0 : index
    %120 = vector.load %arg6[%c0_26, %c0_27] : memref<128x768xbf16, #tpu.memory_space<vmem>>, vector<128x768xbf16>
    %cst_28 = arith.constant dense<0.000000e+00> : vector<8x768xf32>
    %121 = tpu.matmul %119, %120, %cst_28 {dimension_numbers = #tpu.dot_dimension_numbers<[1], [0], [0], [1], [0, 0, 1, 1], [], []>} : vector<8x128xbf16>, vector<128x768xbf16>, vector<8x768xf32> -> vector<8x768xf32>
    %122 = vector.extract_strided_slice %121 {offsets = [0, 0], sizes = [8, 384], strides = [1, 1]} : vector<8x768xf32> to vector<8x384xf32>
    %123 = vector.extract_strided_slice %121 {offsets = [0, 384], sizes = [8, 384], strides = [1, 1]} : vector<8x768xf32> to vector<8x384xf32>
    %124 = arith.negf %122 : vector<8x384xf32>
    %125 = math.exp %124 : vector<8x384xf32>
    %cst_29 = arith.constant 1.000000e+00 : f32
    %126 = vector.broadcast %cst_29 : f32 to vector<8x384xf32>
    %127 = arith.addf %126, %125 : vector<8x384xf32>
    %128 = arith.divf %126, %127 : vector<8x384xf32>
    %129 = arith.mulf %122, %128 : vector<8x384xf32>
    %130 = arith.mulf %129, %123 : vector<8x384xf32>
    %131 = arith.truncf %130 : vector<8x384xf32> to vector<8x384xbf16>
    %c0_30 = arith.constant 0 : index
    %c0_31 = arith.constant 0 : index
    %132 = vector.load %arg7[%c0_30, %c0_31] : memref<384x128xbf16, #tpu.memory_space<vmem>>, vector<384x128xbf16>
    %cst_32 = arith.constant dense<0.000000e+00> : vector<8x128xf32>
    %133 = tpu.matmul %131, %132, %cst_32 {dimension_numbers = #tpu.dot_dimension_numbers<[1], [0], [0], [1], [0, 0, 1, 1], [], []>} : vector<8x384xbf16>, vector<384x128xbf16>, vector<8x128xf32> -> vector<8x128xf32>
    %134 = arith.addf %108, %133 : vector<8x128xf32>
    %c0_33 = arith.constant 0 : index
    %c0_34 = arith.constant 0 : index
    %135 = vector.load %arg8[%c0_33, %c0_34] : memref<8x128xf32, #tpu.memory_space<vmem>>, vector<8x128xf32>
    tpu.vector_store %arg8[%c0_33, %c0_34], %134 {strides = array<i32>} : memref<8x128xf32, #tpu.memory_space<vmem>>, vector<8x128xf32>,
    return
  }
  func.func @transform_0(%arg0: i32) -> (i32, i32) {
    %c0_i32 = arith.constant 0 : i32
    %c0_i32_0 = arith.constant 0 : i32
    return %arg0, %c0_i32 : i32, i32
  }
  func.func @transform_1(%arg0: i32) -> (i32, i32) {
    %c0_i32 = arith.constant 0 : i32
    %c0_i32_0 = arith.constant 0 : i32
    %c0_i32_1 = arith.constant 0 : i32
    return %c0_i32, %c0_i32_0 : i32, i32
  }
  func.func @transform_2(%arg0: i32) -> (i32, i32) {
    %c0_i32 = arith.constant 0 : i32
    %c0_i32_0 = arith.constant 0 : i32
    %c0_i32_1 = arith.constant 0 : i32
    return %c0_i32, %c0_i32_0 : i32, i32
  }
  func.func @transform_3(%arg0: i32) -> (i32, i32) {
    %c0_i32 = arith.constant 0 : i32
    %c0_i32_0 = arith.constant 0 : i32
    %c0_i32_1 = arith.constant 0 : i32
    return %c0_i32, %c0_i32_0 : i32, i32
  }
  func.func @transform_4(%arg0: i32) -> (i32, i32) {
    %c0_i32 = arith.constant 0 : i32
    %c0_i32_0 = arith.constant 0 : i32
    %c0_i32_1 = arith.constant 0 : i32
    return %c0_i32, %c0_i32_0 : i32, i32
  }
  func.func @transform_5(%arg0: i32) -> (i32, i32) {
    %c0_i32 = arith.constant 0 : i32
    %c0_i32_0 = arith.constant 0 : i32
    %c0_i32_1 = arith.constant 0 : i32
    return %c0_i32, %c0_i32_0 : i32, i32
  }
  func.func @transform_6(%arg0: i32) -> (i32, i32) {
    %c0_i32 = arith.constant 0 : i32
    %c0_i32_0 = arith.constant 0 : i32
    %c0_i32_1 = arith.constant 0 : i32
    return %c0_i32, %c0_i32_0 : i32, i32
  }
  func.func @transform_7(%arg0: i32) -> (i32, i32) {
    %c0_i32 = arith.constant 0 : i32
    %c0_i32_0 = arith.constant 0 : i32
    return %arg0, %c0_i32 : i32, i32
  }
  func.func @transform_8(%arg0: i32) -> (i32, i32) {
    %c0_i32 = arith.constant 0 : i32
    %c0_i32_0 = arith.constant 0 : i32
    return %arg0, %c0_i32 : i32, i32
  }
  func.func @transform_9(%arg0: i32) -> (i32, i32) {
    %c0_i32 = arith.constant 0 : i32
    %c0_i32_0 = arith.constant 0 : i32
    return %arg0, %c0_i32 : i32, i32
  }
}

</mosaic_0001>

<llo_original>
// kernel: tpu_custom_call.1
$region0: #{tpu_custom_call.1}
  #allocation0 [shape = 'u32[]', space=smem, size = 0x4, offset = 0x4, fixed_abs, tag = 'smem constant byte address 0x4 - core index']
  #allocation1 [shape = 'u32[144,128]{1,0:T(1,128)}', space=vmem, size = 0x12000, scoped, tag = 'internal scratch']
  %s0 = inlined_call_operand.hbm [shape: f32[16,128], index: 0, kind: input, shape index: {}]
  %s1 = inlined_call_operand.hbm [shape: f32[8,128], index: 1, kind: input, shape index: {}]
  %s2 = inlined_call_operand.hbm [shape: f32[8,128], index: 2, kind: input, shape index: {}]
  %s3 = inlined_call_operand.hbm [shape: bf16[128,384], index: 3, kind: input, shape index: {}]
  %s4 = inlined_call_operand.hbm [shape: bf16[128,128], index: 4, kind: input, shape index: {}]
  %s5 = inlined_call_operand.hbm [shape: bf16[128,768], index: 5, kind: input, shape index: {}]
  %s6 = inlined_call_operand.hbm [shape: bf16[384,128], index: 6, kind: input, shape index: {}]
  %s7 = inlined_call_operand.hbm [shape: f32[16,128], index: 7, kind: output, shape index: {0}]
  %s8 = inlined_call_operand.hbm [shape: f32[16,128], index: 8, kind: output, shape index: {1}]
  %s9 = inlined_call_operand.hbm [shape: f32[16,128], index: 9, kind: output, shape index: {2}]
  %10 = xla_tuple %s7, %s8, %s9
  %s11 = sld [smem:[#allocation0]]
  $region105: #{tpu_custom_call.1} parent=0
    _
  %s13 = ssub.s32 1, %s11
  %s14 = scalar_select 0, %s13, %s11
  $region1: #{tpu_custom_call.1} parent=0
    #allocation2 [shape = 'u8[8192]{0}', space=vmem, size = 0x2000, scoped, tag = 'input window, operand 0']
    #allocation3 [shape = 's32[2]{0}', space=sflag, size = 0x8, scoped, tag = 'scoped memory for tpu_custom_call.1']
    #allocation4 [shape = 's32[2]{0}', space=sflag, size = 0x8, scoped, tag = 'scoped memory for tpu_custom_call.1']
    #allocation5 [shape = 'u8[4096]{0}', space=vmem, size = 0x1000, scoped, tag = 'input window, operand 1, single buffered']
    #allocation6 [shape = 's32[1]{0}', space=sflag, size = 0x4, scoped, tag = 'scoped memory for tpu_custom_call.1']
    #allocation7 [shape = 'u8[4096]{0}', space=vmem, size = 0x1000, scoped, tag = 'input window, operand 2, single buffered']
    #allocation8 [shape = 'u8[98304]{0}', space=vmem, size = 0x18000, scoped, tag = 'input window, operand 3, single buffered']
    #allocation9 [shape = 's32[1]{0}', space=sflag, size = 0x4, scoped, tag = 'scoped memory for tpu_custom_call.1']
    #allocation10 [shape = 'u8[32768]{0}', space=vmem, size = 0x8000, scoped, tag = 'input window, operand 4, single buffered']
    #allocation11 [shape = 'u8[196608]{0}', space=vmem, size = 0x30000, scoped, tag = 'input window, operand 5, single buffered']
    #allocation12 [shape = 's32[1]{0}', space=sflag, size = 0x4, scoped, tag = 'scoped memory for tpu_custom_call.1']
    #allocation13 [shape = 'u8[98304]{0}', space=vmem, size = 0x18000, scoped, tag = 'input window, operand 6, single buffered']
    #allocation14 [shape = 'u8[8192]{0}', space=vmem, size = 0x2000, scoped, tag = 'output window, operand 0']
    #allocation15 [shape = 'u8[8192]{0}', space=vmem, size = 0x2000, scoped, tag = 'output window, operand 1']
    #allocation16 [shape = 's32[2]{0}', space=sflag, size = 0x8, scoped, tag = 'scoped memory for tpu_custom_call.1']
    #allocation17 [shape = 'u8[8192]{0}', space=vmem, size = 0x2000, scoped, tag = 'output window, operand 2']
    %15 = vsyncpa [#allocation3], 0
    %s16 = scalar_lea.sflag [#allocation3], 1
    %17 = vsyncpa %s16, 0
    %18 = vsyncpa [#allocation6], 0
    %19 = vsyncpa [#allocation9], 0
    %20 = vsyncpa [#allocation12], 0
    %21 = vsyncpa [#allocation4], 0
    %s22 = scalar_lea.sflag [#allocation4], 1
    %23 = vsyncpa %s22, 0
    %24 = vsyncpa [#allocation16], 0
    %s25 = scalar_lea.sflag [#allocation16], 1
    %26 = vsyncpa %s25, 0
    loop: start=0, step=1, limit=4
    $region2: #{tpu_custom_call.1} parent=1 // loop_pre_header
      _
    $region3: #{tpu_custom_call.1} parent=1 // loop_header
      %s28 = sphi 0, %s32
      %p29 = scmp.ge.s32.totalorder %s28, 4
      %s38 = sphi 0, %s40
      %s41 = sphi 0, %s38
      %s42 = sphi 0, %s41
      %s58 = sphi 0, %s42
      %s62 = sphi 0, %s62
      %s64 = sphi 0, %s62
      %s65 = sphi 0, %s64
      %s79 = sphi 0, %s65
      %s83 = sphi 0, %s83
      %s85 = sphi 0, %s83
      %s86 = sphi 0, %s85
      %s100 = sphi 0, %s86
      %s104 = sphi 0, %s104
      %s106 = sphi 0, %s104
      %s107 = sphi 0, %s106
      %s121 = sphi 0, %s107
      %s125 = sphi 0, %s125
      %s127 = sphi 0, %s125
      %s128 = sphi 0, %s127
      %s142 = sphi 0, %s128
      %s146 = sphi 0, %s146
      %s148 = sphi 0, %s146
      %s149 = sphi 0, %s148
      %s163 = sphi 0, %s149
      %s167 = sphi 0, %s167
      %s169 = sphi 0, %s167
      %s170 = sphi 0, %s169
      %s184 = sphi 0, %s170
      %s190 = sphi 0, %s192
      %s193 = sphi 0, %s190
      %s194 = sphi 0, %s193
      %s210 = sphi 0, %s194
      %s216 = sphi 0, %s218
      %s219 = sphi 0, %s216
      %s220 = sphi 0, %s219
      %s236 = sphi 0, %s220
      %s242 = sphi 0, %s244
      %s245 = sphi 0, %s242
      %s246 = sphi 0, %s245
      %s262 = sphi 0, %s246
    $region4: #{tpu_custom_call.1} parent=1 // loop_header_branch
      %31 = sbr.rel (%p29) target = $region8
    $region5: #{tpu_custom_call.1} parent=1 // loop_body
      %s33 = ssub.s32 %s28, 1
      %s34 = ssub.s32 %s28, 2
      %s35 = sadd.s32 %s28, 1
      %s36 = ssub.s32 %s28, %s35
      %p37 = scmp.eq.s32.totalorder %s36, 0
      %s39 = sadd.s32 %s38, 1
      %s40 = scalar_select %p37, %s38, %s39
      %p43 = pneg %p37
      %p44 = scmp.eq.s32.totalorder %s28, 1
      %p45 = por %p43, %p44
      %p46 = scmp.ne.s32.totalorder %s38, %s41
      %p47 = scmp.eq.s32.totalorder %s28, 0
      %p48 = por %p46, %p47
      %p49 = scmp.ne.s32.totalorder %s38, %s41
      %p50 = scmp.eq.s32.totalorder %s33, 1
      %p51 = por %p49, %p50
      %p52 = scmp.ne.s32.totalorder %s41, %s42
      %p53 = scmp.eq.s32.totalorder %s33, 0
      %p54 = por %p52, %p53
      %p55 = scmp.ne.s32.totalorder %s41, %s42
      %p56 = scmp.eq.s32.totalorder %s34, 1
      %p57 = por %p55, %p56
      %p59 = scmp.ne.s32.totalorder %s42, %s58
      %p60 = scmp.eq.s32.totalorder %s34, 0
      %p61 = por %p59, %p60
      %s63 = sadd.s32 %s62, 1
      %p66 = scmp.eq.s32.totalorder %s28, 1
      %p67 = scmp.ne.s32.totalorder %s62, %s64
      %p68 = scmp.eq.s32.totalorder %s28, 0
      %p69 = por %p67, %p68
      %p70 = scmp.ne.s32.totalorder %s62, %s64
      %p71 = scmp.eq.s32.totalorder %s33, 1
      %p72 = por %p70, %p71
      %p73 = scmp.ne.s32.totalorder %s64, %s65
      %p74 = scmp.eq.s32.totalorder %s33, 0
      %p75 = por %p73, %p74
      %p76 = scmp.ne.s32.totalorder %s64, %s65
      %p77 = scmp.eq.s32.totalorder %s34, 1
      %p78 = por %p76, %p77
      %p80 = scmp.ne.s32.totalorder %s65, %s79
      %p81 = scmp.eq.s32.totalorder %s34, 0
      %p82 = por %p80, %p81
      %s84 = sadd.s32 %s83, 1
      %p87 = scmp.eq.s32.totalorder %s28, 1
      %p88 = scmp.ne.s32.totalorder %s83, %s85
      %p89 = scmp.eq.s32.totalorder %s28, 0
      %p90 = por %p88, %p89
      %p91 = scmp.ne.s32.totalorder %s83, %s85
      %p92 = scmp.eq.s32.totalorder %s33, 1
      %p93 = por %p91, %p92
      %p94 = scmp.ne.s32.totalorder %s85, %s86
      %p95 = scmp.eq.s32.totalorder %s33, 0
      %p96 = por %p94, %p95
      %p97 = scmp.ne.s32.totalorder %s85, %s86
      %p98 = scmp.eq.s32.totalorder %s34, 1
      %p99 = por %p97, %p98
      %p101 = scmp.ne.s32.totalorder %s86, %s100
      %p102 = scmp.eq.s32.totalorder %s34, 0
      %p103 = por %p101, %p102
      %s105 = sadd.s32 %s104, 1
      %p108 = scmp.eq.s32.totalorder %s28, 1
      %p109 = scmp.ne.s32.totalorder %s104, %s106
      %p110 = scmp.eq.s32.totalorder %s28, 0
      %p111 = por %p109, %p110
      %p112 = scmp.ne.s32.totalorder %s104, %s106
      %p113 = scmp.eq.s32.totalorder %s33, 1
      %p114 = por %p112, %p113
      %p115 = scmp.ne.s32.totalorder %s106, %s107
      %p116 = scmp.eq.s32.totalorder %s33, 0
      %p117 = por %p115, %p116
      %p118 = scmp.ne.s32.totalorder %s106, %s107
      %p119 = scmp.eq.s32.totalorder %s34, 1
      %p120 = por %p118, %p119
      %p122 = scmp.ne.s32.totalorder %s107, %s121
      %p123 = scmp.eq.s32.totalorder %s34, 0
      %p124 = por %p122, %p123
      %s126 = sadd.s32 %s125, 1
      %p129 = scmp.eq.s32.totalorder %s28, 1
      %p130 = scmp.ne.s32.totalorder %s125, %s127
      %p131 = scmp.eq.s32.totalorder %s28, 0
      %p132 = por %p130, %p131
      %p133 = scmp.ne.s32.totalorder %s125, %s127
      %p134 = scmp.eq.s32.totalorder %s33, 1
      %p135 = por %p133, %p134
      %p136 = scmp.ne.s32.totalorder %s127, %s128
      %p137 = scmp.eq.s32.totalorder %s33, 0
      %p138 = por %p136, %p137
      %p139 = scmp.ne.s32.totalorder %s127, %s128
      %p140 = scmp.eq.s32.totalorder %s34, 1
      %p141 = por %p139, %p140
      %p143 = scmp.ne.s32.totalorder %s128, %s142
      %p144 = scmp.eq.s32.totalorder %s34, 0
      %p145 = por %p143, %p144
      %s147 = sadd.s32 %s146, 1
      %p150 = scmp.eq.s32.totalorder %s28, 1
      %p151 = scmp.ne.s32.totalorder %s146, %s148
      %p152 = scmp.eq.s32.totalorder %s28, 0
      %p153 = por %p151, %p152
      %p154 = scmp.ne.s32.totalorder %s146, %s148
      %p155 = scmp.eq.s32.totalorder %s33, 1
      %p156 = por %p154, %p155
      %p157 = scmp.ne.s32.totalorder %s148, %s149
      %p158 = scmp.eq.s32.totalorder %s33, 0
      %p159 = por %p157, %p158
      %p160 = scmp.ne.s32.totalorder %s148, %s149
      %p161 = scmp.eq.s32.totalorder %s34, 1
      %p162 = por %p160, %p161
      %p164 = scmp.ne.s32.totalorder %s149, %s163
      %p165 = scmp.eq.s32.totalorder %s34, 0
      %p166 = por %p164, %p165
      %s168 = sadd.s32 %s167, 1
      %p171 = scmp.eq.s32.totalorder %s28, 1
      %p172 = scmp.ne.s32.totalorder %s167, %s169
      %p173 = scmp.eq.s32.totalorder %s28, 0
      %p174 = por %p172, %p173
      %p175 = scmp.ne.s32.totalorder %s167, %s169
      %p176 = scmp.eq.s32.totalorder %s33, 1
      %p177 = por %p175, %p176
      %p178 = scmp.ne.s32.totalorder %s169, %s170
      %p179 = scmp.eq.s32.totalorder %s33, 0
      %p180 = por %p178, %p179
      %p181 = scmp.ne.s32.totalorder %s169, %s170
      %p182 = scmp.eq.s32.totalorder %s34, 1
      %p183 = por %p181, %p182
      %p185 = scmp.ne.s32.totalorder %s170, %s184
      %p186 = scmp.eq.s32.totalorder %s34, 0
      %p187 = por %p185, %p186
      %s188 = ssub.s32 %s28, %s35
      %p189 = scmp.eq.s32.totalorder %s188, 0
      %s191 = sadd.s32 %s190, 1
      %s192 = scalar_select %p189, %s190, %s191
      %p195 = pneg %p189
      %p196 = scmp.eq.s32.totalorder %s28, 1
      %p197 = por %p195, %p196
      %p198 = scmp.ne.s32.totalorder %s190, %s193
      %p199 = scmp.eq.s32.totalorder %s28, 0
      %p200 = por %p198, %p199
      %p201 = scmp.ne.s32.totalorder %s190, %s193
      %p202 = scmp.eq.s32.totalorder %s33, 1
      %p203 = por %p201, %p202
      %p204 = scmp.ne.s32.totalorder %s193, %s194
      %p205 = scmp.eq.s32.totalorder %s33, 0
      %p206 = por %p204, %p205
      %p207 = scmp.ne.s32.totalorder %s193, %s194
      %p208 = scmp.eq.s32.totalorder %s34, 1
      %p209 = por %p207, %p208
      %p211 = scmp.ne.s32.totalorder %s194, %s210
      %p212 = scmp.eq.s32.totalorder %s34, 0
      %p213 = por %p211, %p212
      %s214 = ssub.s32 %s28, %s35
      %p215 = scmp.eq.s32.totalorder %s214, 0
      %s217 = sadd.s32 %s216, 1
      %s218 = scalar_select %p215, %s216, %s217
      %p221 = pneg %p215
      %p222 = scmp.eq.s32.totalorder %s28, 1
      %p223 = por %p221, %p222
      %p224 = scmp.ne.s32.totalorder %s216, %s219
      %p225 = scmp.eq.s32.totalorder %s28, 0
      %p226 = por %p224, %p225
      %p227 = scmp.ne.s32.totalorder %s216, %s219
      %p228 = scmp.eq.s32.totalorder %s33, 1
      %p229 = por %p227, %p228
      %p230 = scmp.ne.s32.totalorder %s219, %s220
      %p231 = scmp.eq.s32.totalorder %s33, 0
      %p232 = por %p230, %p231
      %p233 = scmp.ne.s32.totalorder %s219, %s220
      %p234 = scmp.eq.s32.totalorder %s34, 1
      %p235 = por %p233, %p234
      %p237 = scmp.ne.s32.totalorder %s220, %s236
      %p238 = scmp.eq.s32.totalorder %s34, 0
      %p239 = por %p237, %p238
      %s240 = ssub.s32 %s28, %s35
      %p241 = scmp.eq.s32.totalorder %s240, 0
      %s243 = sadd.s32 %s242, 1
      %s244 = scalar_select %p241, %s242, %s243
      %p247 = pneg %p241
      %p248 = scmp.eq.s32.totalorder %s28, 1
      %p249 = por %p247, %p248
      %p250 = scmp.ne.s32.totalorder %s242, %s245
      %p251 = scmp.eq.s32.totalorder %s28, 0
      %p252 = por %p250, %p251
      %p253 = scmp.ne.s32.totalorder %s242, %s245
      %p254 = scmp.eq.s32.totalorder %s33, 1
      %p255 = por %p253, %p254
      %p256 = scmp.ne.s32.totalorder %s245, %s246
      %p257 = scmp.eq.s32.totalorder %s33, 0
      %p258 = por %p256, %p257
      %p259 = scmp.ne.s32.totalorder %s245, %s246
      %p260 = scmp.eq.s32.totalorder %s34, 1
      %p261 = por %p259, %p260
      %p263 = scmp.ne.s32.totalorder %s246, %s262
      %p264 = scmp.eq.s32.totalorder %s34, 0
      %p265 = por %p263, %p264
      %p266 = scmp.le.s32.totalorder 1, %s28
      %p267 = scmp.lt.s32.totalorder %s28, 3
      %p268 = pnand %p266, %p267
      %p269 = pneg %p268
      // Predicated region
      $region9: #{tpu_custom_call.1} parent=5 // pred_check
        _
      $region10: #{tpu_custom_call.1} parent=5 // pred_check_branch
        %271 = sbr.rel (%p268) target = $region12
      $region11: #{tpu_custom_call.1} parent=5 // pred_region
        %s272 = ssub.s32 %s28, 1
        // Predicated region
        $region13: #{tpu_custom_call.1} parent=11 // pred_check
          %p273 = pneg %p75
        $region14: #{tpu_custom_call.1} parent=11 // pred_check_branch
          %275 = sbr.rel (%p273) target = $region16
        $region15: #{tpu_custom_call.1} parent=11 // pred_region
          %s277 = ssub.s32 128, 128
          %278 = vsyncadd [#allocation6], %s277
          %s280 = sshll.u32 [#allocation5], 4
          %s281 = int_to_ptr.vmem [resolvable:$true] %s280
          %283 = dma.hbm_to_vmem [thread:$0]  %s1, 128, %s281, [#allocation6]
        $region16: #{tpu_custom_call.1} parent=11 // pred_fallthru
          _
        // Predicated region
        $region17: #{tpu_custom_call.1} parent=11 // pred_check
          %p284 = pneg %p96
        $region18: #{tpu_custom_call.1} parent=11 // pred_check_branch
          %286 = sbr.rel (%p284) target = $region20
        $region19: #{tpu_custom_call.1} parent=11 // pred_region
          %s288 = ssub.s32 128, 128
          %289 = vsyncadd [#allocation6], %s288
          %s291 = sshll.u32 [#allocation7], 4
          %s292 = int_to_ptr.vmem [resolvable:$true] %s291
          %294 = dma.hbm_to_vmem [thread:$0]  %s2, 128, %s292, [#allocation6]
        $region20: #{tpu_custom_call.1} parent=11 // pred_fallthru
          _
        // Predicated region
        $region21: #{tpu_custom_call.1} parent=11 // pred_check
          %p295 = pneg %p117
        $region22: #{tpu_custom_call.1} parent=11 // pred_check_branch
          %297 = sbr.rel (%p295) target = $region24
        $region23: #{tpu_custom_call.1} parent=11 // pred_region
          %s299 = ssub.s32 3072, 3072
          %300 = vsyncadd [#allocation9], %s299
          %s301 = sshll.u32 [#allocation8], 4
          %s302 = int_to_ptr.vmem [resolvable:$true] %s301
          %307 = dma.hbm_to_vmem [thread:$0]  %s3, 3072, %s302, [#allocation9], 192, 192, 12
        $region24: #{tpu_custom_call.1} parent=11 // pred_fallthru
          _
        // Predicated region
        $region25: #{tpu_custom_call.1} parent=11 // pred_check
          %p308 = pneg %p138
        $region26: #{tpu_custom_call.1} parent=11 // pred_check_branch
          %310 = sbr.rel (%p308) target = $region28
        $region27: #{tpu_custom_call.1} parent=11 // pred_region
          %s312 = ssub.s32 1024, 1024
          %313 = vsyncadd [#allocation9], %s312
          %s314 = sshll.u32 [#allocation10], 4
          %s315 = int_to_ptr.vmem [resolvable:$true] %s314
          %320 = dma.hbm_to_vmem [thread:$0]  %s4, 1024, %s315, [#allocation9], 64, 64, 4
        $region28: #{tpu_custom_call.1} parent=11 // pred_fallthru
          _
        // Predicated region
        $region29: #{tpu_custom_call.1} parent=11 // pred_check
          %p321 = pneg %p159
        $region30: #{tpu_custom_call.1} parent=11 // pred_check_branch
          %323 = sbr.rel (%p321) target = $region32
        $region31: #{tpu_custom_call.1} parent=11 // pred_region
          %s325 = ssub.s32 6144, 6144
          %326 = vsyncadd [#allocation12], %s325
          %s327 = sshll.u32 [#allocation11], 4
          %s328 = int_to_ptr.vmem [resolvable:$true] %s327
          %333 = dma.hbm_to_vmem [thread:$0]  %s5, 6144, %s328, [#allocation12], 384, 384, 24
        $region32: #{tpu_custom_call.1} parent=11 // pred_fallthru
          _
        // Predicated region
        $region33: #{tpu_custom_call.1} parent=11 // pred_check
          %p334 = pneg %p180
        $region34: #{tpu_custom_call.1} parent=11 // pred_check_branch
          %336 = sbr.rel (%p334) target = $region36
        $region35: #{tpu_custom_call.1} parent=11 // pred_region
          %s338 = ssub.s32 3072, 3072
          %339 = vsyncadd [#allocation12], %s338
          %s340 = sshll.u32 [#allocation13], 4
          %s341 = int_to_ptr.vmem [resolvable:$true] %s340
          %346 = dma.hbm_to_vmem [thread:$0]  %s6, 3072, %s341, [#allocation12], 64, 64, 4
        $region36: #{tpu_custom_call.1} parent=11 // pred_fallthru
          _
      $region12: #{tpu_custom_call.1} parent=5 // pred_fallthru
        _
      %p347 = scmp.lt.s32.totalorder %s28, 2
      // Predicated region
      $region37: #{tpu_custom_call.1} parent=5 // pred_check
        %p348 = pneg %p347
      $region38: #{tpu_custom_call.1} parent=5 // pred_check_branch
        %350 = sbr.rel (%p348) target = $region40
      $region39: #{tpu_custom_call.1} parent=5 // pred_region
        // Predicated region
        $region41: #{tpu_custom_call.1} parent=39 // pred_check
          %p351 = pneg %p48
        $region42: #{tpu_custom_call.1} parent=39 // pred_check_branch
          %353 = sbr.rel (%p351) target = $region44
        $region43: #{tpu_custom_call.1} parent=39 // pred_region
          %s354 = sand.u32 %s38, 1
          %s355 = scalar_lea.sflag [#allocation3], %s354
          %s356 = sand.u32 %s38, 1
          %s357 = smul.addr %s356, 8
          %s358 = scalar_lea.vmem [#allocation2], %s357
          %s360 = ssub.s32 128, 128
          %361 = vsyncadd %s355, %s360
          %s362 = smul.addr %s28, 128
          %s363 = scalar_lea.hbm %s0, %s362
          %s365 = sshll.u32 %s358, 4
          %s366 = int_to_ptr.vmem [resolvable:$true] %s365
          %368 = dma.hbm_to_vmem [thread:$0]  %s363, 128, %s366, %s355
        $region44: #{tpu_custom_call.1} parent=39 // pred_fallthru
          _
      $region40: #{tpu_custom_call.1} parent=5 // pred_fallthru
        _
      %p369 = scmp.le.s32.totalorder 1, %s28
      %p370 = scmp.lt.s32.totalorder %s28, 3
      %p371 = pnand %p369, %p370
      %p372 = pneg %p371
      // Predicated region
      $region45: #{tpu_custom_call.1} parent=5 // pred_check
        _
      $region46: #{tpu_custom_call.1} parent=5 // pred_check_branch
        %374 = sbr.rel (%p371) target = $region48
      $region47: #{tpu_custom_call.1} parent=5 // pred_region
        %s375 = ssub.s32 %s28, 1
        %s376 = sand.u32 %s41, 1
        %s377 = scalar_lea.sflag [#allocation3], %s376
        %s378 = sand.u32 %s41, 1
        %s379 = smul.addr %s378, 8
        %s380 = scalar_lea.vmem [#allocation2], %s379
        // Predicated region
        $region49: #{tpu_custom_call.1} parent=47 // pred_check
          %p381 = pneg %p54
        $region50: #{tpu_custom_call.1} parent=47 // pred_check_branch
          %383 = sbr.rel (%p381) target = $region52
        $region51: #{tpu_custom_call.1} parent=47 // pred_region
          %384 = dma.done %s377, 128
        $region52: #{tpu_custom_call.1} parent=47 // pred_fallthru
          _
        // Predicated region
        $region53: #{tpu_custom_call.1} parent=47 // pred_check
          %p385 = pneg %p75
        $region54: #{tpu_custom_call.1} parent=47 // pred_check_branch
          %387 = sbr.rel (%p385) target = $region56
        $region55: #{tpu_custom_call.1} parent=47 // pred_region
          %388 = dma.done [#allocation6], 128
        $region56: #{tpu_custom_call.1} parent=47 // pred_fallthru
          _
        // Predicated region
        $region57: #{tpu_custom_call.1} parent=47 // pred_check
          %p389 = pneg %p96
        $region58: #{tpu_custom_call.1} parent=47 // pred_check_branch
          %391 = sbr.rel (%p389) target = $region60
        $region59: #{tpu_custom_call.1} parent=47 // pred_region
          %392 = dma.done [#allocation6], 128
        $region60: #{tpu_custom_call.1} parent=47 // pred_fallthru
          _
        // Predicated region
        $region61: #{tpu_custom_call.1} parent=47 // pred_check
          %p393 = pneg %p117
        $region62: #{tpu_custom_call.1} parent=47 // pred_check_branch
          %395 = sbr.rel (%p393) target = $region64
        $region63: #{tpu_custom_call.1} parent=47 // pred_region
          %396 = dma.done [#allocation9], 3072
        $region64: #{tpu_custom_call.1} parent=47 // pred_fallthru
          _
        // Predicated region
        $region65: #{tpu_custom_call.1} parent=47 // pred_check
          %p397 = pneg %p138
        $region66: #{tpu_custom_call.1} parent=47 // pred_check_branch
          %399 = sbr.rel (%p397) target = $region68
        $region67: #{tpu_custom_call.1} parent=47 // pred_region
          %400 = dma.done [#allocation9], 1024
        $region68: #{tpu_custom_call.1} parent=47 // pred_fallthru
          _
        // Predicated region
        $region69: #{tpu_custom_call.1} parent=47 // pred_check
          %p401 = pneg %p159
        $region70: #{tpu_custom_call.1} parent=47 // pred_check_branch
          %403 = sbr.rel (%p401) target = $region72
        $region71: #{tpu_custom_call.1} parent=47 // pred_region
          %404 = dma.done [#allocation12], 6144
        $region72: #{tpu_custom_call.1} parent=47 // pred_fallthru
          _
        // Predicated region
        $region73: #{tpu_custom_call.1} parent=47 // pred_check
          %p405 = pneg %p180
        $region74: #{tpu_custom_call.1} parent=47 // pred_check_branch
          %407 = sbr.rel (%p405) target = $region76
        $region75: #{tpu_custom_call.1} parent=47 // pred_region
          %408 = dma.done [#allocation12], 3072
        $region76: #{tpu_custom_call.1} parent=47 // pred_fallthru
          _
        %s409 = sand.u32 %s41, 1
        %s410 = scalar_lea.sflag [#allocation3], %s409
        %s411 = sand.u32 %s41, 1
        %s412 = smul.addr %s411, 8
        %s413 = scalar_lea.vmem [#allocation2], %s412
        %p414 = pneg %p54
        %p415 = pneg %p51
        %p416 = pneg %p75
        %p417 = pneg %p72
        %p418 = pneg %p96
        %p419 = pneg %p93
        %p420 = pneg %p117
        %p421 = pneg %p114
        %p422 = pneg %p138
        %p423 = pneg %p135
        %p424 = pneg %p159
        %p425 = pneg %p156
        %p426 = pneg %p180
        %p427 = pneg %p177
        %p428 = pneg %p206
        %p429 = pneg %p203
        %s430 = sand.u32 %s193, 1
        %s431 = scalar_lea.sflag [#allocation4], %s430
        %s432 = sand.u32 %s193, 1
        %s433 = smul.addr %s432, 8
        %s434 = scalar_lea.vmem [#allocation14], %s433
        %p435 = pneg %p232
        %p436 = pneg %p229
        %s437 = sand.u32 %s33, 1
        %s438 = scalar_lea.sflag [#allocation16], %s437
        %s439 = sand.u32 %s219, 1
        %s440 = smul.addr %s439, 8
        %s441 = scalar_lea.vmem [#allocation15], %s440
        %p442 = pneg %p258
        %p443 = pneg %p255
        %s444 = sand.u32 %s33, 1
        %s445 = scalar_lea.sflag [#allocation16], %s444
        %s446 = sand.u32 %s245, 1
        %s447 = smul.addr %s446, 8
        %s448 = scalar_lea.vmem [#allocation17], %s447
        %v450 = vld [vmem:[%s380] sm:$0xff]
        %v451 = vld [vmem:[#allocation5] sm:$0xff]
        %v452 = vld [vmem:[#allocation7] sm:$0xff]
        %v453 = vmul.f32 %v450, %v450
        %454 = vadd.xlane.f32.xlu0 %v453
        %v455 = vpop.xlane.xlu0 %454
        %v456 = vrcp.pop 128.0
        %v457 = vmul.f32 %v455, %v456
        %v458 = vadd.f32 %v457, 0.0001
        %v459 = vrsqrt.pop %v458
        %v460 = vmul.f32 %v450, %v459
        %v461 = vpack.c.bf16 %v460, %v460
        %v462 = vld [vmem:[#allocation8] sm:$0xff]
        %v463 = vld [vmem:[#allocation8 + $0x8] sm:$0xf]
        %v464 = vld [vmem:[#allocation8 + $0xc] sm:$0xff]
        %v465 = vld [vmem:[#allocation8 + $0x14] sm:$0xf]
        %v466 = vld [vmem:[#allocation8 + $0x18] sm:$0xff]
        %v467 = vld [vmem:[#allocation8 + $0x20] sm:$0xf]
        %v468 = vld [vmem:[#allocation8 + $0x24] sm:$0xff]
        %v469 = vld [vmem:[#allocation8 + $0x2c] sm:$0xf]
        %v470 = vld [vmem:[#allocation8 + $0x30] sm:$0xff]
        %v471 = vld [vmem:[#allocation8 + $0x38] sm:$0xf]
        %v472 = vld [vmem:[#allocation8 + $0x3c] sm:$0xff]
        %v473 = vld [vmem:[#allocation8 + $0x44] sm:$0xf]
        %v474 = vld [vmem:[#allocation8 + $0x48] sm:$0xff]
        %v475 = vld [vmem:[#allocation8 + $0x50] sm:$0xf]
        %v476 = vld [vmem:[#allocation8 + $0x54] sm:$0xff]
        %v477 = vld [vmem:[#allocation8 + $0x5c] sm:$0xf]
        %v478 = vld [vmem:[#allocation8 + $0x60] sm:$0xff]
        %v479 = vld [vmem:[#allocation8 + $0x68] sm:$0xf]
        %v480 = vld [vmem:[#allocation8 + $0x6c] sm:$0xff]
        %v481 = vld [vmem:[#allocation8 + $0x74] sm:$0xf]
        %v482 = vld [vmem:[#allocation8 + $0x78] sm:$0xff]
        %v483 = vld [vmem:[#allocation8 + $0x80] sm:$0xf]
        %v484 = vld [vmem:[#allocation8 + $0x84] sm:$0xff]
        %v485 = vld [vmem:[#allocation8 + $0x8c] sm:$0xf]
        %v486 = vld [vmem:[#allocation8 + $0x90] sm:$0xff]
        %v487 = vld [vmem:[#allocation8 + $0x98] sm:$0xf]
        %v488 = vld [vmem:[#allocation8 + $0x9c] sm:$0xff]
        %v489 = vld [vmem:[#allocation8 + $0xa4] sm:$0xf]
        %v490 = vld [vmem:[#allocation8 + $0xa8] sm:$0xff]
        %v491 = vld [vmem:[#allocation8 + $0xb0] sm:$0xf]
        %v492 = vld [vmem:[#allocation8 + $0xb4] sm:$0xff]
        %v493 = vld [vmem:[#allocation8 + $0xbc] sm:$0xf]
        %v526 = vunpack.c.l.b16 %v462
        %v527 = vunpack.c.h.b16 %v462
        %v528 = vunpack.c.l.b16 %v463
        %v529 = vunpack.c.l.b16 %v464
        %v530 = vunpack.c.h.b16 %v464
        %v531 = vunpack.c.l.b16 %v465
        %v532 = vunpack.c.l.b16 %v466
        %v533 = vunpack.c.h.b16 %v466
        %v534 = vunpack.c.l.b16 %v467
        %v535 = vunpack.c.l.b16 %v468
        %v536 = vunpack.c.h.b16 %v468
        %v537 = vunpack.c.l.b16 %v469
        %v538 = vunpack.c.l.b16 %v470
        %v539 = vunpack.c.h.b16 %v470
        %v540 = vunpack.c.l.b16 %v471
        %v541 = vunpack.c.l.b16 %v472
        %v542 = vunpack.c.h.b16 %v472
        %v543 = vunpack.c.l.b16 %v473
        %v544 = vunpack.c.l.b16 %v474
        %v545 = vunpack.c.h.b16 %v474
        %v546 = vunpack.c.l.b16 %v475
        %v547 = vunpack.c.l.b16 %v476
        %v548 = vunpack.c.h.b16 %v476
        %v549 = vunpack.c.l.b16 %v477
        %v550 = vunpack.c.l.b16 %v478
        %v551 = vunpack.c.h.b16 %v478
        %v552 = vunpack.c.l.b16 %v479
        %v553 = vunpack.c.l.b16 %v480
        %v554 = vunpack.c.h.b16 %v480
        %v555 = vunpack.c.l.b16 %v481
        %v556 = vunpack.c.l.b16 %v482
        %v557 = vunpack.c.h.b16 %v482
        %v558 = vunpack.c.l.b16 %v483
        %v559 = vunpack.c.l.b16 %v484
        %v560 = vunpack.c.h.b16 %v484
        %v561 = vunpack.c.l.b16 %v485
        %v562 = vunpack.c.l.b16 %v486
        %v563 = vunpack.c.h.b16 %v486
        %v564 = vunpack.c.l.b16 %v487
        %v565 = vunpack.c.l.b16 %v488
        %v566 = vunpack.c.h.b16 %v488
        %v567 = vunpack.c.l.b16 %v489
        %v568 = vunpack.c.l.b16 %v490
        %v569 = vunpack.c.h.b16 %v490
        %v570 = vunpack.c.l.b16 %v491
        %v571 = vunpack.c.l.b16 %v492
        %v572 = vunpack.c.h.b16 %v492
        %v573 = vunpack.c.l.b16 %v493
        %v574 = vpack.c.b16 %v529, %v526
        %v575 = vpack.c.b16 %v530, %v527
        %v576 = vpack.c.b16 %v531, %v528
        %v577 = vpack.c.b16 %v535, %v532
        %v578 = vpack.c.b16 %v536, %v533
        %v579 = vpack.c.b16 %v537, %v534
        %v580 = vpack.c.b16 %v541, %v538
        %v581 = vpack.c.b16 %v542, %v539
        %v582 = vpack.c.b16 %v543, %v540
        %v583 = vpack.c.b16 %v547, %v544
        %v584 = vpack.c.b16 %v548, %v545
        %v585 = vpack.c.b16 %v549, %v546
        %v586 = vpack.c.b16 %v553, %v550
        %v587 = vpack.c.b16 %v554, %v551
        %v588 = vpack.c.b16 %v555, %v552
        %v589 = vpack.c.b16 %v559, %v556
        %v590 = vpack.c.b16 %v560, %v557
        %v591 = vpack.c.b16 %v561, %v558
        %v592 = vpack.c.b16 %v565, %v562
        %v593 = vpack.c.b16 %v566, %v563
        %v594 = vpack.c.b16 %v567, %v564
        %v595 = vpack.c.b16 %v571, %v568
        %v596 = vpack.c.b16 %v572, %v569
        %v597 = vpack.c.b16 %v573, %v570
        %622 = vmatprep.subr.bf16.mxu0 %v575
        %623 = vmatpush1.bf16.msra.mxu0 %v574
        %624 = vmatprep.subr.bf16.mxu0 %v578
        %625 = vmatpush1.bf16.msra.mxu0 %v577
        %626 = vmatprep.subr.bf16.mxu0 %v581
        %627 = vmatpush1.bf16.msra.mxu0 %v580
        %628 = vmatprep.subr.bf16.mxu0 %v584
        %629 = vmatpush1.bf16.msra.mxu0 %v583
        %630 = vmatprep.subr.bf16.mxu0 %v587
        %631 = vmatpush1.bf16.msra.mxu0 %v586
        %632 = vmatprep.subr.bf16.mxu0 %v590
        %633 = vmatpush1.bf16.msra.mxu0 %v589
        %634 = vmatprep.subr.bf16.mxu0 %v593
        %635 = vmatpush1.bf16.msra.mxu0 %v592
        %636 = vmatprep.subr.bf16.mxu0 %v596
        %637 = vmatpush1.bf16.msra.mxu0 %v595
        %638 = vmatprep.subr.bf16.mxu0 0
        %639 = vmatpush1.bf16.msra.mxu0 0
        %640 = vmatprep.subr.bf16.mxu0 0
        %641 = vmatpush1.bf16.msra.mxu0 0
        %642 = vmatprep.subr.bf16.mxu0 0
        %643 = vmatpush1.bf16.msra.mxu0 0
        %644 = vmatprep.subr.bf16.mxu0 0
        %645 = vmatpush1.bf16.msra.mxu0 0
        %646 = vmatprep.subr.bf16.mxu0 0
        %647 = vmatpush1.bf16.msra.mxu0 0
        %648 = vmatprep.subr.bf16.mxu0 0
        %649 = vmatpush1.bf16.msra.mxu0 0
        %650 = vmatprep.subr.bf16.mxu0 0
        %651 = vmatpush1.bf16.msra.mxu0 0
        %652 = vmatprep.subr.bf16.mxu0 0
        %653 = vmatpush1.bf16.msra.mxu0 0
        %654 = vmatprep.mubr.bf16.mxu0 0
        %655 = vmatmul.mubr.bf16.gmra.mrb[0].mxu0 %v461
        %v656 = vpop.f32.mrb[0].mxu0
        %v657 = vadd.f32 0.0, %v656
        %v658 = vpop.f32.mrb[0].mxu0
        %v659 = vadd.f32 0.0, %v658
        %v660 = vpop.f32.mrb[0].mxu0
        %v661 = vpop.f32.mrb[0].mxu0
        %662 = vdwg.mxu0
        %663 = vmatprep.subr.bf16.mxu0 0
        %664 = vmatpush1.bf16.msra.mxu0 %v576
        %665 = vmatprep.subr.bf16.mxu0 0
        %666 = vmatpush1.bf16.msra.mxu0 %v579
        %667 = vmatprep.subr.bf16.mxu0 0
        %668 = vmatpush1.bf16.msra.mxu0 %v582
        %669 = vmatprep.subr.bf16.mxu0 0
        %670 = vmatpush1.bf16.msra.mxu0 %v585
        %671 = vmatprep.subr.bf16.mxu0 0
        %672 = vmatpush1.bf16.msra.mxu0 %v588
        %673 = vmatprep.subr.bf16.mxu0 0
        %674 = vmatpush1.bf16.msra.mxu0 %v591
        %675 = vmatprep.subr.bf16.mxu0 0
        %676 = vmatpush1.bf16.msra.mxu0 %v594
        %677 = vmatprep.subr.bf16.mxu0 0
        %678 = vmatpush1.bf16.msra.mxu0 %v597
        %679 = vmatprep.subr.bf16.mxu0 0
        %680 = vmatpush1.bf16.msra.mxu0 0
        %681 = vmatprep.subr.bf16.mxu0 0
        %682 = vmatpush1.bf16.msra.mxu0 0
        %683 = vmatprep.subr.bf16.mxu0 0
        %684 = vmatpush1.bf16.msra.mxu0 0
        %685 = vmatprep.subr.bf16.mxu0 0
        %686 = vmatpush1.bf16.msra.mxu0 0
        %687 = vmatprep.subr.bf16.mxu0 0
        %688 = vmatpush1.bf16.msra.mxu0 0
        %689 = vmatprep.subr.bf16.mxu0 0
        %690 = vmatpush1.bf16.msra.mxu0 0
        %691 = vmatprep.subr.bf16.mxu0 0
        %692 = vmatpush1.bf16.msra.mxu0 0
        %693 = vmatprep.subr.bf16.mxu0 0
        %694 = vmatpush1.bf16.msra.mxu0 0
        %695 = vmatprep.mubr.bf16.mxu0 0
        %696 = vmatmul.mubr.bf16.gmra.mrb[0].mxu0 %v461
        %v697 = vpop.f32.mrb[0].mxu0
        %v698 = vadd.f32 0.0, %v697
        %v699 = vpop.f32.mrb[0].mxu0
        %v700 = vpop.f32.mrb[0].mxu0
        %v701 = vpop.f32.mrb[0].mxu0
        %702 = vdwg.mxu0
        %v703 = vmul.f32 %v657, %v451
        %704 = vrot.lane.b32.xlu0 %v657, 64
        %v705 = vpop.permute.xlu0 %704
        %v706 = vmul.f32 %v705, %v452
        %v707 = vadd.f32 %v703, %v706
        %v708 = vmul.f32 %v659, %v451
        %709 = vrot.lane.b32.xlu0 %v659, 64
        %v710 = vpop.permute.xlu0 %709
        %v711 = vmul.f32 %v710, %v452
        %v712 = vadd.f32 %v708, %v711
        %713 = vst [vmem:[%s441] sm:$0xff] %v712
        %714 = vst [vmem:[%s448] sm:$0xff] %v698
        %716 = vrot.lane.b32.xlu0 %v707, 80
        %v717 = vpop.permute.xlu0 %716
        %vm719 = vcmask 130048
        %v720 = vsel %vm719, %v707, %v717
        %721 = vrot.lane.b32.xlu0 %v707, 112
        %v722 = vpop.permute.xlu0 %721
        %724 = vrot.lane.b32.xlu0 %v707, 64
        %v725 = vpop.permute.xlu0 %724
        %v727 = vsel %vm719, %v722, %v725
        %728 = vrot.lane.b32.xlu0 %v707, 96
        %v729 = vpop.permute.xlu0 %728
        %731 = vrot.lane.b32.xlu0 %v707, 48
        %v732 = vpop.permute.xlu0 %731
        %v734 = vsel %vm719, %v729, %v732
        %735 = vrot.lane.b32.xlu0 %v707, 32
        %v736 = vpop.permute.xlu0 %735
        %v738 = vsel %vm719, %v717, %v736
        %v739 = vpack.c.bf16 %v720, %v720
        %v740 = vpack.c.bf16 %v727, %v727
        %v741 = vpack.c.bf16 %v734, %v734
        %v742 = vpack.c.bf16 %v738, %v738
        %744 = vrot.lane.b32.xlu0 %v712, 80
        %v745 = vpop.permute.xlu0 %744
        %v747 = vsel %vm719, %v712, %v745
        %748 = vrot.lane.b32.xlu0 %v712, 112
        %v749 = vpop.permute.xlu0 %748
        %751 = vrot.lane.b32.xlu0 %v712, 64
        %v752 = vpop.permute.xlu0 %751
        %v754 = vsel %vm719, %v749, %v752
        %755 = vrot.lane.b32.xlu0 %v712, 96
        %v756 = vpop.permute.xlu0 %755
        %758 = vrot.lane.b32.xlu0 %v712, 48
        %v759 = vpop.permute.xlu0 %758
        %v761 = vsel %vm719, %v756, %v759
        %762 = vrot.lane.b32.xlu0 %v712, 32
        %v763 = vpop.permute.xlu0 %762
        %v765 = vsel %vm719, %v745, %v763
        %v766 = vpack.c.bf16 %v747, %v747
        %v767 = vpack.c.bf16 %v754, %v754
        %v768 = vpack.c.bf16 %v761, %v761
        %v769 = vpack.c.bf16 %v765, %v765
        %771 = vrot.lane.b32.xlu0 %v698, 96
        %v772 = vpop.permute.xlu0 %771
        %774 = vrot.lane.b32.xlu0 %v698, 64
        %v775 = vpop.permute.xlu0 %774
        %777 = vrot.lane.b32.xlu0 %v698, 32
        %v778 = vpop.permute.xlu0 %777
        %v780 = vpack.c.bf16 %v698, %v698
        %v781 = vpack.c.bf16 %v772, %v772
        %v782 = vpack.c.bf16 %v775, %v775
        %v783 = vpack.c.bf16 %v778, %v778
        %vm784 = vcmask 261120
        %v786 = vsel %vm784, %v739, 0
        %v789 = vsel %vm784, %v766, 0
        %791 = vmatprep.subr.bf16.mxu0 0
        %792 = vmatpush1.bf16.xpose.msra.mxu0 %v789
        %793 = vmatprep.subr.bf16.mxu0 0
        %794 = vmatpush1.bf16.xpose.msra.mxu0 0
        %795 = vmatprep.subr.bf16.mxu0 0
        %796 = vmatpush1.bf16.xpose.msra.mxu0 0
        %797 = vmatprep.subr.bf16.mxu0 0
        %798 = vmatpush1.bf16.xpose.msra.mxu0 0
        %799 = vmatprep.subr.bf16.mxu0 0
        %800 = vmatpush1.bf16.xpose.msra.mxu0 0
        %801 = vmatprep.subr.bf16.mxu0 0
        %802 = vmatpush1.bf16.xpose.msra.mxu0 0
        %803 = vmatprep.subr.bf16.mxu0 0
        %804 = vmatpush1.bf16.xpose.msra.mxu0 0
        %805 = vmatprep.subr.bf16.mxu0 0
        %806 = vmatpush1.bf16.xpose.msra.mxu0 0
        %807 = vmatprep.subr.bf16.mxu0 0
        %808 = vmatpush1.bf16.xpose.msra.mxu0 0
        %809 = vmatprep.subr.bf16.mxu0 0
        %810 = vmatpush1.bf16.xpose.msra.mxu0 0
        %811 = vmatprep.subr.bf16.mxu0 0
        %812 = vmatpush1.bf16.xpose.msra.mxu0 0
        %813 = vmatprep.subr.bf16.mxu0 0
        %814 = vmatpush1.bf16.xpose.msra.mxu0 0
        %815 = vmatprep.subr.bf16.mxu0 0
        %816 = vmatpush1.bf16.xpose.msra.mxu0 0
        %817 = vmatprep.subr.bf16.mxu0 0
        %818 = vmatpush1.bf16.xpose.msra.mxu0 0
        %819 = vmatprep.subr.bf16.mxu0 0
        %820 = vmatpush1.bf16.xpose.msra.mxu0 0
        %821 = vmatprep.subr.bf16.mxu0 0
        %822 = vmatpush1.bf16.xpose.msra.mxu0 0
        %823 = vmatprep.mubr.bf16.mxu0 0
        %824 = vmatmul.mubr.bf16.gmra.mrb[0].mxu0 %v786
        %v825 = vpop.f32.mrb[0].mxu0
        %v826 = vadd.f32 0.0, %v825
        %v827 = vpop.f32.mrb[0].mxu0
        %v828 = vpop.f32.mrb[0].mxu0
        %v829 = vpop.f32.mrb[0].mxu0
        %830 = vdwg.mxu0
        %v832 = vsel %vm784, %v740, 0
        %v835 = vsel %vm784, %v767, 0
        %837 = vmatprep.subr.bf16.mxu0 0
        %838 = vmatpush1.bf16.xpose.msra.mxu0 %v835
        %839 = vmatprep.subr.bf16.mxu0 0
        %840 = vmatpush1.bf16.xpose.msra.mxu0 0
        %841 = vmatprep.subr.bf16.mxu0 0
        %842 = vmatpush1.bf16.xpose.msra.mxu0 0
        %843 = vmatprep.subr.bf16.mxu0 0
        %844 = vmatpush1.bf16.xpose.msra.mxu0 0
        %845 = vmatprep.subr.bf16.mxu0 0
        %846 = vmatpush1.bf16.xpose.msra.mxu0 0
        %847 = vmatprep.subr.bf16.mxu0 0
        %848 = vmatpush1.bf16.xpose.msra.mxu0 0
        %849 = vmatprep.subr.bf16.mxu0 0
        %850 = vmatpush1.bf16.xpose.msra.mxu0 0
        %851 = vmatprep.subr.bf16.mxu0 0
        %852 = vmatpush1.bf16.xpose.msra.mxu0 0
        %853 = vmatprep.subr.bf16.mxu0 0
        %854 = vmatpush1.bf16.xpose.msra.mxu0 0
        %855 = vmatprep.subr.bf16.mxu0 0
        %856 = vmatpush1.bf16.xpose.msra.mxu0 0
        %857 = vmatprep.subr.bf16.mxu0 0
        %858 = vmatpush1.bf16.xpose.msra.mxu0 0
        %859 = vmatprep.subr.bf16.mxu0 0
        %860 = vmatpush1.bf16.xpose.msra.mxu0 0
        %861 = vmatprep.subr.bf16.mxu0 0
        %862 = vmatpush1.bf16.xpose.msra.mxu0 0
        %863 = vmatprep.subr.bf16.mxu0 0
        %864 = vmatpush1.bf16.xpose.msra.mxu0 0
        %865 = vmatprep.subr.bf16.mxu0 0
        %866 = vmatpush1.bf16.xpose.msra.mxu0 0
        %867 = vmatprep.subr.bf16.mxu0 0
        %868 = vmatpush1.bf16.xpose.msra.mxu0 0
        %869 = vmatprep.mubr.bf16.mxu0 0
        %870 = vmatmul.mubr.bf16.gmra.mrb[0].mxu0 %v832
        %v871 = vpop.f32.mrb[0].mxu0
        %v872 = vadd.f32 0.0, %v871
        %v873 = vpop.f32.mrb[0].mxu0
        %v874 = vpop.f32.mrb[0].mxu0
        %v875 = vpop.f32.mrb[0].mxu0
        %876 = vdwg.mxu0
        %v878 = vsel %vm784, %v741, 0
        %v881 = vsel %vm784, %v768, 0
        %883 = vmatprep.subr.bf16.mxu0 0
        %884 = vmatpush1.bf16.xpose.msra.mxu0 %v881
        %885 = vmatprep.subr.bf16.mxu0 0
        %886 = vmatpush1.bf16.xpose.msra.mxu0 0
        %887 = vmatprep.subr.bf16.mxu0 0
        %888 = vmatpush1.bf16.xpose.msra.mxu0 0
        %889 = vmatprep.subr.bf16.mxu0 0
        %890 = vmatpush1.bf16.xpose.msra.mxu0 0
        %891 = vmatprep.subr.bf16.mxu0 0
        %892 = vmatpush1.bf16.xpose.msra.mxu0 0
        %893 = vmatprep.subr.bf16.mxu0 0
        %894 = vmatpush1.bf16.xpose.msra.mxu0 0
        %895 = vmatprep.subr.bf16.mxu0 0
        %896 = vmatpush1.bf16.xpose.msra.mxu0 0
        %897 = vmatprep.subr.bf16.mxu0 0
        %898 = vmatpush1.bf16.xpose.msra.mxu0 0
        %899 = vmatprep.subr.bf16.mxu0 0
        %900 = vmatpush1.bf16.xpose.msra.mxu0 0
        %901 = vmatprep.subr.bf16.mxu0 0
        %902 = vmatpush1.bf16.xpose.msra.mxu0 0
        %903 = vmatprep.subr.bf16.mxu0 0
        %904 = vmatpush1.bf16.xpose.msra.mxu0 0
        %905 = vmatprep.subr.bf16.mxu0 0
        %906 = vmatpush1.bf16.xpose.msra.mxu0 0
        %907 = vmatprep.subr.bf16.mxu0 0
        %908 = vmatpush1.bf16.xpose.msra.mxu0 0
        %909 = vmatprep.subr.bf16.mxu0 0
        %910 = vmatpush1.bf16.xpose.msra.mxu0 0
        %911 = vmatprep.subr.bf16.mxu0 0
        %912 = vmatpush1.bf16.xpose.msra.mxu0 0
        %913 = vmatprep.subr.bf16.mxu0 0
        %914 = vmatpush1.bf16.xpose.msra.mxu0 0
        %915 = vmatprep.mubr.bf16.mxu0 0
        %916 = vmatmul.mubr.bf16.gmra.mrb[0].mxu0 %v878
        %v917 = vpop.f32.mrb[0].mxu0
        %v918 = vadd.f32 0.0, %v917
        %v919 = vpop.f32.mrb[0].mxu0
        %v920 = vpop.f32.mrb[0].mxu0
        %v921 = vpop.f32.mrb[0].mxu0
        %922 = vdwg.mxu0
        %v924 = vsel %vm784, %v742, 0
        %v927 = vsel %vm784, %v769, 0
        %929 = vmatprep.subr.bf16.mxu0 0
        %930 = vmatpush1.bf16.xpose.msra.mxu0 %v927
        %931 = vmatprep.subr.bf16.mxu0 0
        %932 = vmatpush1.bf16.xpose.msra.mxu0 0
        %933 = vmatprep.subr.bf16.mxu0 0
        %934 = vmatpush1.bf16.xpose.msra.mxu0 0
        %935 = vmatprep.subr.bf16.mxu0 0
        %936 = vmatpush1.bf16.xpose.msra.mxu0 0
        %937 = vmatprep.subr.bf16.mxu0 0
        %938 = vmatpush1.bf16.xpose.msra.mxu0 0
        %939 = vmatprep.subr.bf16.mxu0 0
        %940 = vmatpush1.bf16.xpose.msra.mxu0 0
        %941 = vmatprep.subr.bf16.mxu0 0
        %942 = vmatpush1.bf16.xpose.msra.mxu0 0
        %943 = vmatprep.subr.bf16.mxu0 0
        %944 = vmatpush1.bf16.xpose.msra.mxu0 0
        %945 = vmatprep.subr.bf16.mxu0 0
        %946 = vmatpush1.bf16.xpose.msra.mxu0 0
        %947 = vmatprep.subr.bf16.mxu0 0
        %948 = vmatpush1.bf16.xpose.msra.mxu0 0
        %949 = vmatprep.subr.bf16.mxu0 0
        %950 = vmatpush1.bf16.xpose.msra.mxu0 0
        %951 = vmatprep.subr.bf16.mxu0 0
        %952 = vmatpush1.bf16.xpose.msra.mxu0 0
        %953 = vmatprep.subr.bf16.mxu0 0
        %954 = vmatpush1.bf16.xpose.msra.mxu0 0
        %955 = vmatprep.subr.bf16.mxu0 0
        %956 = vmatpush1.bf16.xpose.msra.mxu0 0
        %957 = vmatprep.subr.bf16.mxu0 0
        %958 = vmatpush1.bf16.xpose.msra.mxu0 0
        %959 = vmatprep.subr.bf16.mxu0 0
        %960 = vmatpush1.bf16.xpose.msra.mxu0 0
        %961 = vmatprep.mubr.bf16.mxu0 0
        %962 = vmatmul.mubr.bf16.gmra.mrb[0].mxu0 %v924
        %v963 = vpop.f32.mrb[0].mxu0
        %v964 = vadd.f32 0.0, %v963
        %v965 = vpop.f32.mrb[0].mxu0
        %v966 = vpop.f32.mrb[0].mxu0
        %v967 = vpop.f32.mrb[0].mxu0
        %968 = vdwg.mxu0
        %v969 = vlaneseq
        %v970 = vshrl.u32 %v969, 7
        %v971 = vlaneseq
        %v972 = vand.u32 %v971, 127
        %vm973 = vcmp.ge.s32.totalorder %v970, %v972
        %v974 = vsel %vm973, 1, 0
        %vm975 = vcmp.eq.s32.totalorder %v974, 1
        %v976 = vsel %vm975, %v826, -1e+30
        %v977 = vsel %vm975, %v872, -1e+30
        %v978 = vsel %vm975, %v918, -1e+30
        %v979 = vsel %vm975, %v964, -1e+30
        %vm980 = vcmask 64512
        %v981 = vsel %vm980, %v976, -inf
        %982 = vmax.xlane.f32.xlu0 %v981
        %v983 = vpop.xlane.xlu0 %982
        %v984 = vsel %vm980, %v977, -inf
        %985 = vmax.xlane.f32.xlu0 %v984
        %v986 = vpop.xlane.xlu0 %985
        %v987 = vsel %vm980, %v978, -inf
        %988 = vmax.xlane.f32.xlu0 %v987
        %v989 = vpop.xlane.xlu0 %988
        %v990 = vsel %vm980, %v979, -inf
        %991 = vmax.xlane.f32.xlu0 %v990
        %v992 = vpop.xlane.xlu0 %991
        %v993 = vsub.f32 %v976, %v983
        %v994 = vsub.f32 %v977, %v986
        %v995 = vsub.f32 %v978, %v989
        %v996 = vsub.f32 %v979, %v992
        %v997 = vmul.f32 %v993, 1.442695
        %v998 = vpow.pop %v997
        %v999 = vmul.f32 %v994, 1.442695
        %v1000 = vpow.pop %v999
        %v1001 = vmul.f32 %v995, 1.442695
        %v1002 = vpow.pop %v1001
        %v1003 = vmul.f32 %v996, 1.442695
        %v1004 = vpow.pop %v1003
        %v1005 = vsel %vm980, %v998, 0.0
        %1006 = vadd.xlane.f32.xlu0 %v1005
        %v1007 = vpop.xlane.xlu0 %1006
        %v1008 = vsel %vm980, %v1000, 0.0
        %1009 = vadd.xlane.f32.xlu0 %v1008
        %v1010 = vpop.xlane.xlu0 %1009
        %v1011 = vsel %vm980, %v1002, 0.0
        %1012 = vadd.xlane.f32.xlu0 %v1011
        %v1013 = vpop.xlane.xlu0 %1012
        %v1014 = vsel %vm980, %v1004, 0.0
        %1015 = vadd.xlane.f32.xlu0 %v1014
        %v1016 = vpop.xlane.xlu0 %1015
        %v1017 = vrcp.pop %v1007
        %v1018 = vrcp.pop %v1010
        %v1019 = vrcp.pop %v1013
        %v1020 = vrcp.pop %v1016
        %v1021 = vmul.f32 %v998, %v1017
        %v1022 = vmul.f32 %v1000, %v1018
        %v1023 = vmul.f32 %v1002, %v1019
        %v1024 = vmul.f32 %v1004, %v1020
        %v1025 = vpack.c.bf16 %v1021, %v1021
        %v1026 = vpack.c.bf16 %v1022, %v1022
        %v1027 = vpack.c.bf16 %v1023, %v1023
        %v1028 = vpack.c.bf16 %v1024, %v1024
        %v1030 = vsel %vm980, %v1025, 0
        %vm1032 = vcmask 1043456
        %v1034 = vsel %vm1032, %v780, 0
        %1036 = vmatprep.subr.bf16.mxu0 0
        %1037 = vmatpush1.bf16.msra.mxu0 %v1034
        %1038 = vmatprep.subr.bf16.mxu0 0
        %1039 = vmatpush1.bf16.msra.mxu0 0
        %1040 = vmatprep.subr.bf16.mxu0 0
        %1041 = vmatpush1.bf16.msra.mxu0 0
        %1042 = vmatprep.subr.bf16.mxu0 0
        %1043 = vmatpush1.bf16.msra.mxu0 0
        %1044 = vmatprep.subr.bf16.mxu0 0
        %1045 = vmatpush1.bf16.msra.mxu0 0
        %1046 = vmatprep.subr.bf16.mxu0 0
        %1047 = vmatpush1.bf16.msra.mxu0 0
        %1048 = vmatprep.subr.bf16.mxu0 0
        %1049 = vmatpush1.bf16.msra.mxu0 0
        %1050 = vmatprep.subr.bf16.mxu0 0
        %1051 = vmatpush1.bf16.msra.mxu0 0
        %1052 = vmatprep.subr.bf16.mxu0 0
        %1053 = vmatpush1.bf16.msra.mxu0 0
        %1054 = vmatprep.subr.bf16.mxu0 0
        %1055 = vmatpush1.bf16.msra.mxu0 0
        %1056 = vmatprep.subr.bf16.mxu0 0
        %1057 = vmatpush1.bf16.msra.mxu0 0
        %1058 = vmatprep.subr.bf16.mxu0 0
        %1059 = vmatpush1.bf16.msra.mxu0 0
        %1060 = vmatprep.subr.bf16.mxu0 0
        %1061 = vmatpush1.bf16.msra.mxu0 0
        %1062 = vmatprep.subr.bf16.mxu0 0
        %1063 = vmatpush1.bf16.msra.mxu0 0
        %1064 = vmatprep.subr.bf16.mxu0 0
        %1065 = vmatpush1.bf16.msra.mxu0 0
        %1066 = vmatprep.subr.bf16.mxu0 0
        %1067 = vmatpush1.bf16.msra.mxu0 0
        %1068 = vmatprep.mubr.bf16.mxu0 0
        %1069 = vmatmul.mubr.bf16.gmra.mrb[0].mxu0 %v1030
        %v1070 = vpop.f32.mrb[0].mxu0
        %v1071 = vadd.f32 0.0, %v1070
        %v1072 = vpop.f32.mrb[0].mxu0
        %v1073 = vpop.f32.mrb[0].mxu0
        %v1074 = vpop.f32.mrb[0].mxu0
        %1075 = vdwg.mxu0
        %v1077 = vsel %vm980, %v1026, 0
        %v1080 = vsel %vm1032, %v781, 0
        %1082 = vmatprep.subr.bf16.mxu0 0
        %1083 = vmatpush1.bf16.msra.mxu0 %v1080
        %1084 = vmatprep.subr.bf16.mxu0 0
        %1085 = vmatpush1.bf16.msra.mxu0 0
        %1086 = vmatprep.subr.bf16.mxu0 0
        %1087 = vmatpush1.bf16.msra.mxu0 0
        %1088 = vmatprep.subr.bf16.mxu0 0
        %1089 = vmatpush1.bf16.msra.mxu0 0
        %1090 = vmatprep.subr.bf16.mxu0 0
        %1091 = vmatpush1.bf16.msra.mxu0 0
        %1092 = vmatprep.subr.bf16.mxu0 0
        %1093 = vmatpush1.bf16.msra.mxu0 0
        %1094 = vmatprep.subr.bf16.mxu0 0
        %1095 = vmatpush1.bf16.msra.mxu0 0
        %1096 = vmatprep.subr.bf16.mxu0 0
        %1097 = vmatpush1.bf16.msra.mxu0 0
        %1098 = vmatprep.subr.bf16.mxu0 0
        %1099 = vmatpush1.bf16.msra.mxu0 0
        %1100 = vmatprep.subr.bf16.mxu0 0
        %1101 = vmatpush1.bf16.msra.mxu0 0
        %1102 = vmatprep.subr.bf16.mxu0 0
        %1103 = vmatpush1.bf16.msra.mxu0 0
        %1104 = vmatprep.subr.bf16.mxu0 0
        %1105 = vmatpush1.bf16.msra.mxu0 0
        %1106 = vmatprep.subr.bf16.mxu0 0
        %1107 = vmatpush1.bf16.msra.mxu0 0
        %1108 = vmatprep.subr.bf16.mxu0 0
        %1109 = vmatpush1.bf16.msra.mxu0 0
        %1110 = vmatprep.subr.bf16.mxu0 0
        %1111 = vmatpush1.bf16.msra.mxu0 0
        %1112 = vmatprep.subr.bf16.mxu0 0
        %1113 = vmatpush1.bf16.msra.mxu0 0
        %1114 = vmatprep.mubr.bf16.mxu0 0
        %1115 = vmatmul.mubr.bf16.gmra.mrb[0].mxu0 %v1077
        %v1116 = vpop.f32.mrb[0].mxu0
        %v1117 = vadd.f32 0.0, %v1116
        %v1118 = vpop.f32.mrb[0].mxu0
        %v1119 = vpop.f32.mrb[0].mxu0
        %v1120 = vpop.f32.mrb[0].mxu0
        %1121 = vdwg.mxu0
        %v1123 = vsel %vm980, %v1027, 0
        %v1126 = vsel %vm1032, %v782, 0
        %1128 = vmatprep.subr.bf16.mxu0 0
        %1129 = vmatpush1.bf16.msra.mxu0 %v1126
        %1130 = vmatprep.subr.bf16.mxu0 0
        %1131 = vmatpush1.bf16.msra.mxu0 0
        %1132 = vmatprep.subr.bf16.mxu0 0
        %1133 = vmatpush1.bf16.msra.mxu0 0
        %1134 = vmatprep.subr.bf16.mxu0 0
        %1135 = vmatpush1.bf16.msra.mxu0 0
        %1136 = vmatprep.subr.bf16.mxu0 0
        %1137 = vmatpush1.bf16.msra.mxu0 0
        %1138 = vmatprep.subr.bf16.mxu0 0
        %1139 = vmatpush1.bf16.msra.mxu0 0
        %1140 = vmatprep.subr.bf16.mxu0 0
        %1141 = vmatpush1.bf16.msra.mxu0 0
        %1142 = vmatprep.subr.bf16.mxu0 0
        %1143 = vmatpush1.bf16.msra.mxu0 0
        %1144 = vmatprep.subr.bf16.mxu0 0
        %1145 = vmatpush1.bf16.msra.mxu0 0
        %1146 = vmatprep.subr.bf16.mxu0 0
        %1147 = vmatpush1.bf16.msra.mxu0 0
        %1148 = vmatprep.subr.bf16.mxu0 0
        %1149 = vmatpush1.bf16.msra.mxu0 0
        %1150 = vmatprep.subr.bf16.mxu0 0
        %1151 = vmatpush1.bf16.msra.mxu0 0
        %1152 = vmatprep.subr.bf16.mxu0 0
        %1153 = vmatpush1.bf16.msra.mxu0 0
        %1154 = vmatprep.subr.bf16.mxu0 0
        %1155 = vmatpush1.bf16.msra.mxu0 0
        %1156 = vmatprep.subr.bf16.mxu0 0
        %1157 = vmatpush1.bf16.msra.mxu0 0
        %1158 = vmatprep.subr.bf16.mxu0 0
        %1159 = vmatpush1.bf16.msra.mxu0 0
        %1160 = vmatprep.mubr.bf16.mxu0 0
        %1161 = vmatmul.mubr.bf16.gmra.mrb[0].mxu0 %v1123
        %v1162 = vpop.f32.mrb[0].mxu0
        %v1163 = vadd.f32 0.0, %v1162
        %v1164 = vpop.f32.mrb[0].mxu0
        %v1165 = vpop.f32.mrb[0].mxu0
        %v1166 = vpop.f32.mrb[0].mxu0
        %1167 = vdwg.mxu0
        %v1169 = vsel %vm980, %v1028, 0
        %v1172 = vsel %vm1032, %v783, 0
        %1174 = vmatprep.subr.bf16.mxu0 0
        %1175 = vmatpush1.bf16.msra.mxu0 %v1172
        %1176 = vmatprep.subr.bf16.mxu0 0
        %1177 = vmatpush1.bf16.msra.mxu0 0
        %1178 = vmatprep.subr.bf16.mxu0 0
        %1179 = vmatpush1.bf16.msra.mxu0 0
        %1180 = vmatprep.subr.bf16.mxu0 0
        %1181 = vmatpush1.bf16.msra.mxu0 0
        %1182 = vmatprep.subr.bf16.mxu0 0
        %1183 = vmatpush1.bf16.msra.mxu0 0
        %1184 = vmatprep.subr.bf16.mxu0 0
        %1185 = vmatpush1.bf16.msra.mxu0 0
        %1186 = vmatprep.subr.bf16.mxu0 0
        %1187 = vmatpush1.bf16.msra.mxu0 0
        %1188 = vmatprep.subr.bf16.mxu0 0
        %1189 = vmatpush1.bf16.msra.mxu0 0
        %1190 = vmatprep.subr.bf16.mxu0 0
        %1191 = vmatpush1.bf16.msra.mxu0 0
        %1192 = vmatprep.subr.bf16.mxu0 0
        %1193 = vmatpush1.bf16.msra.mxu0 0
        %1194 = vmatprep.subr.bf16.mxu0 0
        %1195 = vmatpush1.bf16.msra.mxu0 0
        %1196 = vmatprep.subr.bf16.mxu0 0
        %1197 = vmatpush1.bf16.msra.mxu0 0
        %1198 = vmatprep.subr.bf16.mxu0 0
        %1199 = vmatpush1.bf16.msra.mxu0 0
        %1200 = vmatprep.subr.bf16.mxu0 0
        %1201 = vmatpush1.bf16.msra.mxu0 0
        %1202 = vmatprep.subr.bf16.mxu0 0
        %1203 = vmatpush1.bf16.msra.mxu0 0
        %1204 = vmatprep.subr.bf16.mxu0 0
        %1205 = vmatpush1.bf16.msra.mxu0 0
        %1206 = vmatprep.mubr.bf16.mxu0 0
        %1207 = vmatmul.mubr.bf16.gmra.mrb[0].mxu0 %v1169
        %v1208 = vpop.f32.mrb[0].mxu0
        %v1209 = vadd.f32 0.0, %v1208
        %v1210 = vpop.f32.mrb[0].mxu0
        %v1211 = vpop.f32.mrb[0].mxu0
        %v1212 = vpop.f32.mrb[0].mxu0
        %1213 = vdwg.mxu0
        %1215 = vrot.lane.b32.xlu0 %v1117, 32
        %v1216 = vpop.permute.xlu0 %1215
        %1219 = vrot.lane.b32.xlu0 %v1163, 64
        %v1220 = vpop.permute.xlu0 %1219
        %1223 = vrot.lane.b32.xlu0 %v1209, 96
        %v1224 = vpop.permute.xlu0 %1223
        %v1226 = vsel %vm784, %v1071, %v1216
        %vm1227 = vcmask 523264
        %v1228 = vsel %vm1227, %v1226, %v1220
        %vm1229 = vcmask 785408
        %v1230 = vsel %vm1229, %v1228, %v1224
        %v1231 = vpack.c.bf16 %v1230, %v1230
        %v1232 = vld [vmem:[#allocation10] sm:$0xf]
        %v1233 = vld [vmem:[#allocation10 + $0x4] sm:$0xf]
        %v1234 = vld [vmem:[#allocation10 + $0x8] sm:$0xf]
        %v1235 = vld [vmem:[#allocation10 + $0xc] sm:$0xf]
        %v1236 = vld [vmem:[#allocation10 + $0x10] sm:$0xf]
        %v1237 = vld [vmem:[#allocation10 + $0x14] sm:$0xf]
        %v1238 = vld [vmem:[#allocation10 + $0x18] sm:$0xf]
        %v1239 = vld [vmem:[#allocation10 + $0x1c] sm:$0xf]
        %v1240 = vld [vmem:[#allocation10 + $0x20] sm:$0xf]
        %v1241 = vld [vmem:[#allocation10 + $0x24] sm:$0xf]
        %v1242 = vld [vmem:[#allocation10 + $0x28] sm:$0xf]
        %v1243 = vld [vmem:[#allocation10 + $0x2c] sm:$0xf]
        %v1244 = vld [vmem:[#allocation10 + $0x30] sm:$0xf]
        %v1245 = vld [vmem:[#allocation10 + $0x34] sm:$0xf]
        %v1246 = vld [vmem:[#allocation10 + $0x38] sm:$0xf]
        %v1247 = vld [vmem:[#allocation10 + $0x3c] sm:$0xf]
        %v1264 = vunpack.c.l.b16 %v1232
        %v1265 = vunpack.c.l.b16 %v1233
        %v1266 = vunpack.c.l.b16 %v1234
        %v1267 = vunpack.c.l.b16 %v1235
        %v1268 = vunpack.c.l.b16 %v1236
        %v1269 = vunpack.c.l.b16 %v1237
        %v1270 = vunpack.c.l.b16 %v1238
        %v1271 = vunpack.c.l.b16 %v1239
        %v1272 = vunpack.c.l.b16 %v1240
        %v1273 = vunpack.c.l.b16 %v1241
        %v1274 = vunpack.c.l.b16 %v1242
        %v1275 = vunpack.c.l.b16 %v1243
        %v1276 = vunpack.c.l.b16 %v1244
        %v1277 = vunpack.c.l.b16 %v1245
        %v1278 = vunpack.c.l.b16 %v1246
        %v1279 = vunpack.c.l.b16 %v1247
        %v1280 = vpack.c.b16 %v1265, %v1264
        %v1281 = vpack.c.b16 %v1267, %v1266
        %v1282 = vpack.c.b16 %v1269, %v1268
        %v1283 = vpack.c.b16 %v1271, %v1270
        %v1284 = vpack.c.b16 %v1273, %v1272
        %v1285 = vpack.c.b16 %v1275, %v1274
        %v1286 = vpack.c.b16 %v1277, %v1276
        %v1287 = vpack.c.b16 %v1279, %v1278
        %1296 = vmatprep.subr.bf16.mxu0 0
        %1297 = vmatpush1.bf16.msra.mxu0 %v1280
        %1298 = vmatprep.subr.bf16.mxu0 0
        %1299 = vmatpush1.bf16.msra.mxu0 %v1281
        %1300 = vmatprep.subr.bf16.mxu0 0
        %1301 = vmatpush1.bf16.msra.mxu0 %v1282
        %1302 = vmatprep.subr.bf16.mxu0 0
        %1303 = vmatpush1.bf16.msra.mxu0 %v1283
        %1304 = vmatprep.subr.bf16.mxu0 0
        %1305 = vmatpush1.bf16.msra.mxu0 %v1284
        %1306 = vmatprep.subr.bf16.mxu0 0
        %1307 = vmatpush1.bf16.msra.mxu0 %v1285
        %1308 = vmatprep.subr.bf16.mxu0 0
        %1309 = vmatpush1.bf16.msra.mxu0 %v1286
        %1310 = vmatprep.subr.bf16.mxu0 0
        %1311 = vmatpush1.bf16.msra.mxu0 %v1287
        %1312 = vmatprep.subr.bf16.mxu0 0
        %1313 = vmatpush1.bf16.msra.mxu0 0
        %1314 = vmatprep.subr.bf16.mxu0 0
        %1315 = vmatpush1.bf16.msra.mxu0 0
        %1316 = vmatprep.subr.bf16.mxu0 0
        %1317 = vmatpush1.bf16.msra.mxu0 0
        %1318 = vmatprep.subr.bf16.mxu0 0
        %1319 = vmatpush1.bf16.msra.mxu0 0
        %1320 = vmatprep.subr.bf16.mxu0 0
        %1321 = vmatpush1.bf16.msra.mxu0 0
        %1322 = vmatprep.subr.bf16.mxu0 0
        %1323 = vmatpush1.bf16.msra.mxu0 0
        %1324 = vmatprep.subr.bf16.mxu0 0
        %1325 = vmatpush1.bf16.msra.mxu0 0
        %1326 = vmatprep.subr.bf16.mxu0 0
        %1327 = vmatpush1.bf16.msra.mxu0 0
        %1328 = vmatprep.mubr.bf16.mxu0 0
        %1329 = vmatmul.mubr.bf16.gmra.mrb[0].mxu0 %v1231
        %v1330 = vpop.f32.mrb[0].mxu0
        %v1331 = vadd.f32 0.0, %v1330
        %v1332 = vpop.f32.mrb[0].mxu0
        %v1333 = vpop.f32.mrb[0].mxu0
        %v1334 = vpop.f32.mrb[0].mxu0
        %1335 = vdwg.mxu0
        %v1336 = vadd.f32 %v450, %v1331
        %v1337 = vmul.f32 %v1336, %v1336
        %1338 = vadd.xlane.f32.xlu0 %v1337
        %v1339 = vpop.xlane.xlu0 %1338
        %v1340 = vmul.f32 %v1339, %v456
        %v1341 = vadd.f32 %v1340, 0.0001
        %v1342 = vrsqrt.pop %v1341
        %v1343 = vmul.f32 %v1336, %v1342
        %v1344 = vpack.c.bf16 %v1343, %v1343
        %v1345 = vld [vmem:[#allocation11] sm:$0xff]
        %v1346 = vld [vmem:[#allocation11 + $0x8] sm:$0xff]
        %v1347 = vld [vmem:[#allocation11 + $0x10] sm:$0xff]
        %v1348 = vld [vmem:[#allocation11 + $0x18] sm:$0xff]
        %v1349 = vld [vmem:[#allocation11 + $0x20] sm:$0xff]
        %v1350 = vld [vmem:[#allocation11 + $0x28] sm:$0xff]
        %v1351 = vld [vmem:[#allocation11 + $0x30] sm:$0xff]
        %v1352 = vld [vmem:[#allocation11 + $0x38] sm:$0xff]
        %v1353 = vld [vmem:[#allocation11 + $0x40] sm:$0xff]
        %v1354 = vld [vmem:[#allocation11 + $0x48] sm:$0xff]
        %v1355 = vld [vmem:[#allocation11 + $0x50] sm:$0xff]
        %v1356 = vld [vmem:[#allocation11 + $0x58] sm:$0xff]
        %v1357 = vld [vmem:[#allocation11 + $0x60] sm:$0xff]
        %v1358 = vld [vmem:[#allocation11 + $0x68] sm:$0xff]
        %v1359 = vld [vmem:[#allocation11 + $0x70] sm:$0xff]
        %v1360 = vld [vmem:[#allocation11 + $0x78] sm:$0xff]
        %v1361 = vld [vmem:[#allocation11 + $0x80] sm:$0xff]
        %v1362 = vld [vmem:[#allocation11 + $0x88] sm:$0xff]
        %v1363 = vld [vmem:[#allocation11 + $0x90] sm:$0xff]
        %v1364 = vld [vmem:[#allocation11 + $0x98] sm:$0xff]
        %v1365 = vld [vmem:[#allocation11 + $0xa0] sm:$0xff]
        %v1366 = vld [vmem:[#allocation11 + $0xa8] sm:$0xff]
        %v1367 = vld [vmem:[#allocation11 + $0xb0] sm:$0xff]
        %v1368 = vld [vmem:[#allocation11 + $0xb8] sm:$0xff]
        %v1369 = vld [vmem:[#allocation11 + $0xc0] sm:$0xff]
        %v1370 = vld [vmem:[#allocation11 + $0xc8] sm:$0xff]
        %v1371 = vld [vmem:[#allocation11 + $0xd0] sm:$0xff]
        %v1372 = vld [vmem:[#allocation11 + $0xd8] sm:$0xff]
        %v1373 = vld [vmem:[#allocation11 + $0xe0] sm:$0xff]
        %v1374 = vld [vmem:[#allocation11 + $0xe8] sm:$0xff]
        %v1375 = vld [vmem:[#allocation11 + $0xf0] sm:$0xff]
        %v1376 = vld [vmem:[#allocation11 + $0xf8] sm:$0xff]
        %v1377 = vld [vmem:[#allocation11 + $0x100] sm:$0xff]
        %v1378 = vld [vmem:[#allocation11 + $0x108] sm:$0xff]
        %v1379 = vld [vmem:[#allocation11 + $0x110] sm:$0xff]
        %v1380 = vld [vmem:[#allocation11 + $0x118] sm:$0xff]
        %v1381 = vld [vmem:[#allocation11 + $0x120] sm:$0xff]
        %v1382 = vld [vmem:[#allocation11 + $0x128] sm:$0xff]
        %v1383 = vld [vmem:[#allocation11 + $0x130] sm:$0xff]
        %v1384 = vld [vmem:[#allocation11 + $0x138] sm:$0xff]
        %v1385 = vld [vmem:[#allocation11 + $0x140] sm:$0xff]
        %v1386 = vld [vmem:[#allocation11 + $0x148] sm:$0xff]
        %v1387 = vld [vmem:[#allocation11 + $0x150] sm:$0xff]
        %v1388 = vld [vmem:[#allocation11 + $0x158] sm:$0xff]
        %v1389 = vld [vmem:[#allocation11 + $0x160] sm:$0xff]
        %v1390 = vld [vmem:[#allocation11 + $0x168] sm:$0xff]
        %v1391 = vld [vmem:[#allocation11 + $0x170] sm:$0xff]
        %v1392 = vld [vmem:[#allocation11 + $0x178] sm:$0xff]
        %v1441 = vunpack.c.l.b16 %v1345
        %v1442 = vunpack.c.h.b16 %v1345
        %v1443 = vunpack.c.l.b16 %v1346
        %v1444 = vunpack.c.h.b16 %v1346
        %v1445 = vunpack.c.l.b16 %v1347
        %v1446 = vunpack.c.h.b16 %v1347
        %v1447 = vunpack.c.l.b16 %v1348
        %v1448 = vunpack.c.h.b16 %v1348
        %v1449 = vunpack.c.l.b16 %v1349
        %v1450 = vunpack.c.h.b16 %v1349
        %v1451 = vunpack.c.l.b16 %v1350
        %v1452 = vunpack.c.h.b16 %v1350
        %v1453 = vunpack.c.l.b16 %v1351
        %v1454 = vunpack.c.h.b16 %v1351
        %v1455 = vunpack.c.l.b16 %v1352
        %v1456 = vunpack.c.h.b16 %v1352
        %v1457 = vunpack.c.l.b16 %v1353
        %v1458 = vunpack.c.h.b16 %v1353
        %v1459 = vunpack.c.l.b16 %v1354
        %v1460 = vunpack.c.h.b16 %v1354
        %v1461 = vunpack.c.l.b16 %v1355
        %v1462 = vunpack.c.h.b16 %v1355
        %v1463 = vunpack.c.l.b16 %v1356
        %v1464 = vunpack.c.h.b16 %v1356
        %v1465 = vunpack.c.l.b16 %v1357
        %v1466 = vunpack.c.h.b16 %v1357
        %v1467 = vunpack.c.l.b16 %v1358
        %v1468 = vunpack.c.h.b16 %v1358
        %v1469 = vunpack.c.l.b16 %v1359
        %v1470 = vunpack.c.h.b16 %v1359
        %v1471 = vunpack.c.l.b16 %v1360
        %v1472 = vunpack.c.h.b16 %v1360
        %v1473 = vunpack.c.l.b16 %v1361
        %v1474 = vunpack.c.h.b16 %v1361
        %v1475 = vunpack.c.l.b16 %v1362
        %v1476 = vunpack.c.h.b16 %v1362
        %v1477 = vunpack.c.l.b16 %v1363
        %v1478 = vunpack.c.h.b16 %v1363
        %v1479 = vunpack.c.l.b16 %v1364
        %v1480 = vunpack.c.h.b16 %v1364
        %v1481 = vunpack.c.l.b16 %v1365
        %v1482 = vunpack.c.h.b16 %v1365
        %v1483 = vunpack.c.l.b16 %v1366
        %v1484 = vunpack.c.h.b16 %v1366
        %v1485 = vunpack.c.l.b16 %v1367
        %v1486 = vunpack.c.h.b16 %v1367
        %v1487 = vunpack.c.l.b16 %v1368
        %v1488 = vunpack.c.h.b16 %v1368
        %v1489 = vunpack.c.l.b16 %v1369
        %v1490 = vunpack.c.h.b16 %v1369
        %v1491 = vunpack.c.l.b16 %v1370
        %v1492 = vunpack.c.h.b16 %v1370
        %v1493 = vunpack.c.l.b16 %v1371
        %v1494 = vunpack.c.h.b16 %v1371
        %v1495 = vunpack.c.l.b16 %v1372
        %v1496 = vunpack.c.h.b16 %v1372
        %v1497 = vunpack.c.l.b16 %v1373
        %v1498 = vunpack.c.h.b16 %v1373
        %v1499 = vunpack.c.l.b16 %v1374
        %v1500 = vunpack.c.h.b16 %v1374
        %v1501 = vunpack.c.l.b16 %v1375
        %v1502 = vunpack.c.h.b16 %v1375
        %v1503 = vunpack.c.l.b16 %v1376
        %v1504 = vunpack.c.h.b16 %v1376
        %v1505 = vunpack.c.l.b16 %v1377
        %v1506 = vunpack.c.h.b16 %v1377
        %v1507 = vunpack.c.l.b16 %v1378
        %v1508 = vunpack.c.h.b16 %v1378
        %v1509 = vunpack.c.l.b16 %v1379
        %v1510 = vunpack.c.h.b16 %v1379
        %v1511 = vunpack.c.l.b16 %v1380
        %v1512 = vunpack.c.h.b16 %v1380
        %v1513 = vunpack.c.l.b16 %v1381
        %v1514 = vunpack.c.h.b16 %v1381
        %v1515 = vunpack.c.l.b16 %v1382
        %v1516 = vunpack.c.h.b16 %v1382
        %v1517 = vunpack.c.l.b16 %v1383
        %v1518 = vunpack.c.h.b16 %v1383
        %v1519 = vunpack.c.l.b16 %v1384
        %v1520 = vunpack.c.h.b16 %v1384
        %v1521 = vunpack.c.l.b16 %v1385
        %v1522 = vunpack.c.h.b16 %v1385
        %v1523 = vunpack.c.l.b16 %v1386
        %v1524 = vunpack.c.h.b16 %v1386
        %v1525 = vunpack.c.l.b16 %v1387
        %v1526 = vunpack.c.h.b16 %v1387
        %v1527 = vunpack.c.l.b16 %v1388
        %v1528 = vunpack.c.h.b16 %v1388
        %v1529 = vunpack.c.l.b16 %v1389
        %v1530 = vunpack.c.h.b16 %v1389
        %v1531 = vunpack.c.l.b16 %v1390
        %v1532 = vunpack.c.h.b16 %v1390
        %v1533 = vunpack.c.l.b16 %v1391
        %v1534 = vunpack.c.h.b16 %v1391
        %v1535 = vunpack.c.l.b16 %v1392
        %v1536 = vunpack.c.h.b16 %v1392
        %v1537 = vpack.c.b16 %v1447, %v1441
        %v1538 = vpack.c.b16 %v1448, %v1442
        %v1539 = vpack.c.b16 %v1449, %v1443
        %v1540 = vpack.c.b16 %v1450, %v1444
        %v1541 = vpack.c.b16 %v1451, %v1445
        %v1542 = vpack.c.b16 %v1452, %v1446
        %v1543 = vpack.c.b16 %v1459, %v1453
        %v1544 = vpack.c.b16 %v1460, %v1454
        %v1545 = vpack.c.b16 %v1461, %v1455
        %v1546 = vpack.c.b16 %v1462, %v1456
        %v1547 = vpack.c.b16 %v1463, %v1457
        %v1548 = vpack.c.b16 %v1464, %v1458
        %v1549 = vpack.c.b16 %v1471, %v1465
        %v1550 = vpack.c.b16 %v1472, %v1466
        %v1551 = vpack.c.b16 %v1473, %v1467
        %v1552 = vpack.c.b16 %v1474, %v1468
        %v1553 = vpack.c.b16 %v1475, %v1469
        %v1554 = vpack.c.b16 %v1476, %v1470
        %v1555 = vpack.c.b16 %v1483, %v1477
        %v1556 = vpack.c.b16 %v1484, %v1478
        %v1557 = vpack.c.b16 %v1485, %v1479
        %v1558 = vpack.c.b16 %v1486, %v1480
        %v1559 = vpack.c.b16 %v1487, %v1481
        %v1560 = vpack.c.b16 %v1488, %v1482
        %v1561 = vpack.c.b16 %v1495, %v1489
        %v1562 = vpack.c.b16 %v1496, %v1490
        %v1563 = vpack.c.b16 %v1497, %v1491
        %v1564 = vpack.c.b16 %v1498, %v1492
        %v1565 = vpack.c.b16 %v1499, %v1493
        %v1566 = vpack.c.b16 %v1500, %v1494
        %v1567 = vpack.c.b16 %v1507, %v1501
        %v1568 = vpack.c.b16 %v1508, %v1502
        %v1569 = vpack.c.b16 %v1509, %v1503
        %v1570 = vpack.c.b16 %v1510, %v1504
        %v1571 = vpack.c.b16 %v1511, %v1505
        %v1572 = vpack.c.b16 %v1512, %v1506
        %v1573 = vpack.c.b16 %v1519, %v1513
        %v1574 = vpack.c.b16 %v1520, %v1514
        %v1575 = vpack.c.b16 %v1521, %v1515
        %v1576 = vpack.c.b16 %v1522, %v1516
        %v1577 = vpack.c.b16 %v1523, %v1517
        %v1578 = vpack.c.b16 %v1524, %v1518
        %v1579 = vpack.c.b16 %v1531, %v1525
        %v1580 = vpack.c.b16 %v1532, %v1526
        %v1581 = vpack.c.b16 %v1533, %v1527
        %v1582 = vpack.c.b16 %v1534, %v1528
        %v1583 = vpack.c.b16 %v1535, %v1529
        %v1584 = vpack.c.b16 %v1536, %v1530
        %1633 = vmatprep.subr.bf16.mxu0 %v1538
        %1634 = vmatpush1.bf16.msra.mxu0 %v1537
        %1635 = vmatprep.subr.bf16.mxu0 %v1544
        %1636 = vmatpush1.bf16.msra.mxu0 %v1543
        %1637 = vmatprep.subr.bf16.mxu0 %v1550
        %1638 = vmatpush1.bf16.msra.mxu0 %v1549
        %1639 = vmatprep.subr.bf16.mxu0 %v1556
        %1640 = vmatpush1.bf16.msra.mxu0 %v1555
        %1641 = vmatprep.subr.bf16.mxu0 %v1562
        %1642 = vmatpush1.bf16.msra.mxu0 %v1561
        %1643 = vmatprep.subr.bf16.mxu0 %v1568
        %1644 = vmatpush1.bf16.msra.mxu0 %v1567
        %1645 = vmatprep.subr.bf16.mxu0 %v1574
        %1646 = vmatpush1.bf16.msra.mxu0 %v1573
        %1647 = vmatprep.subr.bf16.mxu0 %v1580
        %1648 = vmatpush1.bf16.msra.mxu0 %v1579
        %1649 = vmatprep.subr.bf16.mxu0 0
        %1650 = vmatpush1.bf16.msra.mxu0 0
        %1651 = vmatprep.subr.bf16.mxu0 0
        %1652 = vmatpush1.bf16.msra.mxu0 0
        %1653 = vmatprep.subr.bf16.mxu0 0
        %1654 = vmatpush1.bf16.msra.mxu0 0
        %1655 = vmatprep.subr.bf16.mxu0 0
        %1656 = vmatpush1.bf16.msra.mxu0 0
        %1657 = vmatprep.subr.bf16.mxu0 0
        %1658 = vmatpush1.bf16.msra.mxu0 0
        %1659 = vmatprep.subr.bf16.mxu0 0
        %1660 = vmatpush1.bf16.msra.mxu0 0
        %1661 = vmatprep.subr.bf16.mxu0 0
        %1662 = vmatpush1.bf16.msra.mxu0 0
        %1663 = vmatprep.subr.bf16.mxu0 0
        %1664 = vmatpush1.bf16.msra.mxu0 0
        %1665 = vmatprep.mubr.bf16.mxu0 0
        %1666 = vmatmul.mubr.bf16.gmra.mrb[0].mxu0 %v1344
        %v1667 = vpop.f32.mrb[0].mxu0
        %v1668 = vadd.f32 0.0, %v1667
        %v1669 = vpop.f32.mrb[0].mxu0
        %v1670 = vadd.f32 0.0, %v1669
        %v1671 = vpop.f32.mrb[0].mxu0
        %v1672 = vpop.f32.mrb[0].mxu0
        %1673 = vdwg.mxu0
        %1674 = vmatprep.subr.bf16.mxu0 %v1540
        %1675 = vmatpush1.bf16.msra.mxu0 %v1539
        %1676 = vmatprep.subr.bf16.mxu0 %v1546
        %1677 = vmatpush1.bf16.msra.mxu0 %v1545
        %1678 = vmatprep.subr.bf16.mxu0 %v1552
        %1679 = vmatpush1.bf16.msra.mxu0 %v1551
        %1680 = vmatprep.subr.bf16.mxu0 %v1558
        %1681 = vmatpush1.bf16.msra.mxu0 %v1557
        %1682 = vmatprep.subr.bf16.mxu0 %v1564
        %1683 = vmatpush1.bf16.msra.mxu0 %v1563
        %1684 = vmatprep.subr.bf16.mxu0 %v1570
        %1685 = vmatpush1.bf16.msra.mxu0 %v1569
        %1686 = vmatprep.subr.bf16.mxu0 %v1576
        %1687 = vmatpush1.bf16.msra.mxu0 %v1575
        %1688 = vmatprep.subr.bf16.mxu0 %v1582
        %1689 = vmatpush1.bf16.msra.mxu0 %v1581
        %1690 = vmatprep.subr.bf16.mxu0 0
        %1691 = vmatpush1.bf16.msra.mxu0 0
        %1692 = vmatprep.subr.bf16.mxu0 0
        %1693 = vmatpush1.bf16.msra.mxu0 0
        %1694 = vmatprep.subr.bf16.mxu0 0
        %1695 = vmatpush1.bf16.msra.mxu0 0
        %1696 = vmatprep.subr.bf16.mxu0 0
        %1697 = vmatpush1.bf16.msra.mxu0 0
        %1698 = vmatprep.subr.bf16.mxu0 0
        %1699 = vmatpush1.bf16.msra.mxu0 0
        %1700 = vmatprep.subr.bf16.mxu0 0
        %1701 = vmatpush1.bf16.msra.mxu0 0
        %1702 = vmatprep.subr.bf16.mxu0 0
        %1703 = vmatpush1.bf16.msra.mxu0 0
        %1704 = vmatprep.subr.bf16.mxu0 0
        %1705 = vmatpush1.bf16.msra.mxu0 0
        %1706 = vmatprep.mubr.bf16.mxu0 0
        %1707 = vmatmul.mubr.bf16.gmra.mrb[0].mxu0 %v1344
        %v1708 = vpop.f32.mrb[0].mxu0
        %v1709 = vadd.f32 0.0, %v1708
        %v1710 = vpop.f32.mrb[0].mxu0
        %v1711 = vadd.f32 0.0, %v1710
        %v1712 = vpop.f32.mrb[0].mxu0
        %v1713 = vpop.f32.mrb[0].mxu0
        %1714 = vdwg.mxu0
        %1715 = vmatprep.subr.bf16.mxu0 %v1542
        %1716 = vmatpush1.bf16.msra.mxu0 %v1541
        %1717 = vmatprep.subr.bf16.mxu0 %v1548
        %1718 = vmatpush1.bf16.msra.mxu0 %v1547
        %1719 = vmatprep.subr.bf16.mxu0 %v1554
        %1720 = vmatpush1.bf16.msra.mxu0 %v1553
        %1721 = vmatprep.subr.bf16.mxu0 %v1560
        %1722 = vmatpush1.bf16.msra.mxu0 %v1559
        %1723 = vmatprep.subr.bf16.mxu0 %v1566
        %1724 = vmatpush1.bf16.msra.mxu0 %v1565
        %1725 = vmatprep.subr.bf16.mxu0 %v1572
        %1726 = vmatpush1.bf16.msra.mxu0 %v1571
        %1727 = vmatprep.subr.bf16.mxu0 %v1578
        %1728 = vmatpush1.bf16.msra.mxu0 %v1577
        %1729 = vmatprep.subr.bf16.mxu0 %v1584
        %1730 = vmatpush1.bf16.msra.mxu0 %v1583
        %1731 = vmatprep.subr.bf16.mxu0 0
        %1732 = vmatpush1.bf16.msra.mxu0 0
        %1733 = vmatprep.subr.bf16.mxu0 0
        %1734 = vmatpush1.bf16.msra.mxu0 0
        %1735 = vmatprep.subr.bf16.mxu0 0
        %1736 = vmatpush1.bf16.msra.mxu0 0
        %1737 = vmatprep.subr.bf16.mxu0 0
        %1738 = vmatpush1.bf16.msra.mxu0 0
        %1739 = vmatprep.subr.bf16.mxu0 0
        %1740 = vmatpush1.bf16.msra.mxu0 0
        %1741 = vmatprep.subr.bf16.mxu0 0
        %1742 = vmatpush1.bf16.msra.mxu0 0
        %1743 = vmatprep.subr.bf16.mxu0 0
        %1744 = vmatpush1.bf16.msra.mxu0 0
        %1745 = vmatprep.subr.bf16.mxu0 0
        %1746 = vmatpush1.bf16.msra.mxu0 0
        %1747 = vmatprep.mubr.bf16.mxu0 0
        %1748 = vmatmul.mubr.bf16.gmra.mrb[0].mxu0 %v1344
        %v1749 = vpop.f32.mrb[0].mxu0
        %v1750 = vadd.f32 0.0, %v1749
        %v1751 = vpop.f32.mrb[0].mxu0
        %v1752 = vadd.f32 0.0, %v1751
        %v1753 = vpop.f32.mrb[0].mxu0
        %v1754 = vpop.f32.mrb[0].mxu0
        %1755 = vdwg.mxu0
        %v1756 = vxor.u32 %v1668, 2147483648
        %v1757 = vxor.u32 %v1670, 2147483648
        %v1758 = vxor.u32 %v1709, 2147483648
        %v1759 = vmul.f32 %v1756, 1.442695
        %v1760 = vpow.pop %v1759
        %v1761 = vmul.f32 %v1757, 1.442695
        %v1762 = vpow.pop %v1761
        %v1763 = vmul.f32 %v1758, 1.442695
        %v1764 = vpow.pop %v1763
        %v1765 = vadd.f32 %v1760, 1.0
        %v1766 = vadd.f32 %v1762, 1.0
        %v1767 = vadd.f32 %v1764, 1.0
        %v1768 = vrcp.pop %v1765
        %v1769 = vmul.f32 1.0, %v1768
        %v1770 = vrcp.pop %v1766
        %v1771 = vmul.f32 1.0, %v1770
        %v1772 = vrcp.pop %v1767
        %v1773 = vmul.f32 1.0, %v1772
        %v1774 = vmul.f32 %v1668, %v1769
        %v1775 = vmul.f32 %v1670, %v1771
        %v1776 = vmul.f32 %v1709, %v1773
        %v1777 = vmul.f32 %v1774, %v1711
        %v1778 = vmul.f32 %v1775, %v1750
        %v1779 = vmul.f32 %v1776, %v1752
        %v1780 = vpack.c.bf16 %v1777, %v1777
        %v1781 = vpack.c.bf16 %v1778, %v1778
        %v1782 = vpack.c.bf16 %v1779, %v1779
        %v1783 = vld [vmem:[#allocation13] sm:$0xf]
        %v1784 = vld [vmem:[#allocation13 + $0x4] sm:$0xf]
        %v1785 = vld [vmem:[#allocation13 + $0x8] sm:$0xf]
        %v1786 = vld [vmem:[#allocation13 + $0xc] sm:$0xf]
        %v1787 = vld [vmem:[#allocation13 + $0x10] sm:$0xf]
        %v1788 = vld [vmem:[#allocation13 + $0x14] sm:$0xf]
        %v1789 = vld [vmem:[#allocation13 + $0x18] sm:$0xf]
        %v1790 = vld [vmem:[#allocation13 + $0x1c] sm:$0xf]
        %v1791 = vld [vmem:[#allocation13 + $0x20] sm:$0xf]
        %v1792 = vld [vmem:[#allocation13 + $0x24] sm:$0xf]
        %v1793 = vld [vmem:[#allocation13 + $0x28] sm:$0xf]
        %v1794 = vld [vmem:[#allocation13 + $0x2c] sm:$0xf]
        %v1795 = vld [vmem:[#allocation13 + $0x30] sm:$0xf]
        %v1796 = vld [vmem:[#allocation13 + $0x34] sm:$0xf]
        %v1797 = vld [vmem:[#allocation13 + $0x38] sm:$0xf]
        %v1798 = vld [vmem:[#allocation13 + $0x3c] sm:$0xf]
        %v1799 = vld [vmem:[#allocation13 + $0x40] sm:$0xf]
        %v1800 = vld [vmem:[#allocation13 + $0x44] sm:$0xf]
        %v1801 = vld [vmem:[#allocation13 + $0x48] sm:$0xf]
        %v1802 = vld [vmem:[#allocation13 + $0x4c] sm:$0xf]
        %v1803 = vld [vmem:[#allocation13 + $0x50] sm:$0xf]
        %v1804 = vld [vmem:[#allocation13 + $0x54] sm:$0xf]
        %v1805 = vld [vmem:[#allocation13 + $0x58] sm:$0xf]
        %v1806 = vld [vmem:[#allocation13 + $0x5c] sm:$0xf]
        %v1807 = vld [vmem:[#allocation13 + $0x60] sm:$0xf]
        %v1808 = vld [vmem:[#allocation13 + $0x64] sm:$0xf]
        %v1809 = vld [vmem:[#allocation13 + $0x68] sm:$0xf]
        %v1810 = vld [vmem:[#allocation13 + $0x6c] sm:$0xf]
        %v1811 = vld [vmem:[#allocation13 + $0x70] sm:$0xf]
        %v1812 = vld [vmem:[#allocation13 + $0x74] sm:$0xf]
        %v1813 = vld [vmem:[#allocation13 + $0x78] sm:$0xf]
        %v1814 = vld [vmem:[#allocation13 + $0x7c] sm:$0xf]
        %v1815 = vld [vmem:[#allocation13 + $0x80] sm:$0xf]
        %v1816 = vld [vmem:[#allocation13 + $0x84] sm:$0xf]
        %v1817 = vld [vmem:[#allocation13 + $0x88] sm:$0xf]
        %v1818 = vld [vmem:[#allocation13 + $0x8c] sm:$0xf]
        %v1819 = vld [vmem:[#allocation13 + $0x90] sm:$0xf]
        %v1820 = vld [vmem:[#allocation13 + $0x94] sm:$0xf]
        %v1821 = vld [vmem:[#allocation13 + $0x98] sm:$0xf]
        %v1822 = vld [vmem:[#allocation13 + $0x9c] sm:$0xf]
        %v1823 = vld [vmem:[#allocation13 + $0xa0] sm:$0xf]
        %v1824 = vld [vmem:[#allocation13 + $0xa4] sm:$0xf]
        %v1825 = vld [vmem:[#allocation13 + $0xa8] sm:$0xf]
        %v1826 = vld [vmem:[#allocation13 + $0xac] sm:$0xf]
        %v1827 = vld [vmem:[#allocation13 + $0xb0] sm:$0xf]
        %v1828 = vld [vmem:[#allocation13 + $0xb4] sm:$0xf]
        %v1829 = vld [vmem:[#allocation13 + $0xb8] sm:$0xf]
        %v1830 = vld [vmem:[#allocation13 + $0xbc] sm:$0xf]
        %v1879 = vunpack.c.l.b16 %v1783
        %v1880 = vunpack.c.l.b16 %v1784
        %v1881 = vunpack.c.l.b16 %v1785
        %v1882 = vunpack.c.l.b16 %v1786
        %v1883 = vunpack.c.l.b16 %v1787
        %v1884 = vunpack.c.l.b16 %v1788
        %v1885 = vunpack.c.l.b16 %v1789
        %v1886 = vunpack.c.l.b16 %v1790
        %v1887 = vunpack.c.l.b16 %v1791
        %v1888 = vunpack.c.l.b16 %v1792
        %v1889 = vunpack.c.l.b16 %v1793
        %v1890 = vunpack.c.l.b16 %v1794
        %v1891 = vunpack.c.l.b16 %v1795
        %v1892 = vunpack.c.l.b16 %v1796
        %v1893 = vunpack.c.l.b16 %v1797
        %v1894 = vunpack.c.l.b16 %v1798
        %v1895 = vunpack.c.l.b16 %v1799
        %v1896 = vunpack.c.l.b16 %v1800
        %v1897 = vunpack.c.l.b16 %v1801
        %v1898 = vunpack.c.l.b16 %v1802
        %v1899 = vunpack.c.l.b16 %v1803
        %v1900 = vunpack.c.l.b16 %v1804
        %v1901 = vunpack.c.l.b16 %v1805
        %v1902 = vunpack.c.l.b16 %v1806
        %v1903 = vunpack.c.l.b16 %v1807
        %v1904 = vunpack.c.l.b16 %v1808
        %v1905 = vunpack.c.l.b16 %v1809
        %v1906 = vunpack.c.l.b16 %v1810
        %v1907 = vunpack.c.l.b16 %v1811
        %v1908 = vunpack.c.l.b16 %v1812
        %v1909 = vunpack.c.l.b16 %v1813
        %v1910 = vunpack.c.l.b16 %v1814
        %v1911 = vunpack.c.l.b16 %v1815
        %v1912 = vunpack.c.l.b16 %v1816
        %v1913 = vunpack.c.l.b16 %v1817
        %v1914 = vunpack.c.l.b16 %v1818
        %v1915 = vunpack.c.l.b16 %v1819
        %v1916 = vunpack.c.l.b16 %v1820
        %v1917 = vunpack.c.l.b16 %v1821
        %v1918 = vunpack.c.l.b16 %v1822
        %v1919 = vunpack.c.l.b16 %v1823
        %v1920 = vunpack.c.l.b16 %v1824
        %v1921 = vunpack.c.l.b16 %v1825
        %v1922 = vunpack.c.l.b16 %v1826
        %v1923 = vunpack.c.l.b16 %v1827
        %v1924 = vunpack.c.l.b16 %v1828
        %v1925 = vunpack.c.l.b16 %v1829
        %v1926 = vunpack.c.l.b16 %v1830
        %v1927 = vpack.c.b16 %v1880, %v1879
        %v1928 = vpack.c.b16 %v1882, %v1881
        %v1929 = vpack.c.b16 %v1884, %v1883
        %v1930 = vpack.c.b16 %v1886, %v1885
        %v1931 = vpack.c.b16 %v1888, %v1887
        %v1932 = vpack.c.b16 %v1890, %v1889
        %v1933 = vpack.c.b16 %v1892, %v1891
        %v1934 = vpack.c.b16 %v1894, %v1893
        %v1935 = vpack.c.b16 %v1896, %v1895
        %v1936 = vpack.c.b16 %v1898, %v1897
        %v1937 = vpack.c.b16 %v1900, %v1899
        %v1938 = vpack.c.b16 %v1902, %v1901
        %v1939 = vpack.c.b16 %v1904, %v1903
        %v1940 = vpack.c.b16 %v1906, %v1905
        %v1941 = vpack.c.b16 %v1908, %v1907
        %v1942 = vpack.c.b16 %v1910, %v1909
        %v1943 = vpack.c.b16 %v1912, %v1911
        %v1944 = vpack.c.b16 %v1914, %v1913
        %v1945 = vpack.c.b16 %v1916, %v1915
        %v1946 = vpack.c.b16 %v1918, %v1917
        %v1947 = vpack.c.b16 %v1920, %v1919
        %v1948 = vpack.c.b16 %v1922, %v1921
        %v1949 = vpack.c.b16 %v1924, %v1923
        %v1950 = vpack.c.b16 %v1926, %v1925
        %1975 = vmatprep.subr.bf16.mxu0 0
        %1976 = vmatpush1.bf16.msra.mxu0 %v1927
        %1977 = vmatprep.subr.bf16.mxu0 0
        %1978 = vmatpush1.bf16.msra.mxu0 %v1928
        %1979 = vmatprep.subr.bf16.mxu0 0
        %1980 = vmatpush1.bf16.msra.mxu0 %v1929
        %1981 = vmatprep.subr.bf16.mxu0 0
        %1982 = vmatpush1.bf16.msra.mxu0 %v1930
        %1983 = vmatprep.subr.bf16.mxu0 0
        %1984 = vmatpush1.bf16.msra.mxu0 %v1931
        %1985 = vmatprep.subr.bf16.mxu0 0
        %1986 = vmatpush1.bf16.msra.mxu0 %v1932
        %1987 = vmatprep.subr.bf16.mxu0 0
        %1988 = vmatpush1.bf16.msra.mxu0 %v1933
        %1989 = vmatprep.subr.bf16.mxu0 0
        %1990 = vmatpush1.bf16.msra.mxu0 %v1934
        %1991 = vmatprep.subr.bf16.mxu0 0
        %1992 = vmatpush1.bf16.msra.mxu0 %v1935
        %1993 = vmatprep.subr.bf16.mxu0 0
        %1994 = vmatpush1.bf16.msra.mxu0 %v1936
        %1995 = vmatprep.subr.bf16.mxu0 0
        %1996 = vmatpush1.bf16.msra.mxu0 %v1937
        %1997 = vmatprep.subr.bf16.mxu0 0
        %1998 = vmatpush1.bf16.msra.mxu0 %v1938
        %1999 = vmatprep.subr.bf16.mxu0 0
        %2000 = vmatpush1.bf16.msra.mxu0 %v1939
        %2001 = vmatprep.subr.bf16.mxu0 0
        %2002 = vmatpush1.bf16.msra.mxu0 %v1940
        %2003 = vmatprep.subr.bf16.mxu0 0
        %2004 = vmatpush1.bf16.msra.mxu0 %v1941
        %2005 = vmatprep.subr.bf16.mxu0 0
        %2006 = vmatpush1.bf16.msra.mxu0 %v1942
        %2007 = vmatprep.mubr.bf16.mxu0 %v1781
        %2008 = vmatmul.mubr.bf16.gmra.mrb[0].mxu0 %v1780
        %v2009 = vpop.f32.mrb[0].mxu0
        %v2010 = vadd.f32 0.0, %v2009
        %v2011 = vpop.f32.mrb[0].mxu0
        %v2012 = vpop.f32.mrb[0].mxu0
        %v2013 = vpop.f32.mrb[0].mxu0
        %2014 = vdwg.mxu0
        %2015 = vmatprep.subr.bf16.mxu0 0
        %2016 = vmatpush1.bf16.msra.mxu0 %v1943
        %2017 = vmatprep.subr.bf16.mxu0 0
        %2018 = vmatpush1.bf16.msra.mxu0 %v1944
        %2019 = vmatprep.subr.bf16.mxu0 0
        %2020 = vmatpush1.bf16.msra.mxu0 %v1945
        %2021 = vmatprep.subr.bf16.mxu0 0
        %2022 = vmatpush1.bf16.msra.mxu0 %v1946
        %2023 = vmatprep.subr.bf16.mxu0 0
        %2024 = vmatpush1.bf16.msra.mxu0 %v1947
        %2025 = vmatprep.subr.bf16.mxu0 0
        %2026 = vmatpush1.bf16.msra.mxu0 %v1948
        %2027 = vmatprep.subr.bf16.mxu0 0
        %2028 = vmatpush1.bf16.msra.mxu0 %v1949
        %2029 = vmatprep.subr.bf16.mxu0 0
        %2030 = vmatpush1.bf16.msra.mxu0 %v1950
        %2031 = vmatprep.subr.bf16.mxu0 0
        %2032 = vmatpush1.bf16.msra.mxu0 0
        %2033 = vmatprep.subr.bf16.mxu0 0
        %2034 = vmatpush1.bf16.msra.mxu0 0
        %2035 = vmatprep.subr.bf16.mxu0 0
        %2036 = vmatpush1.bf16.msra.mxu0 0
        %2037 = vmatprep.subr.bf16.mxu0 0
        %2038 = vmatpush1.bf16.msra.mxu0 0
        %2039 = vmatprep.subr.bf16.mxu0 0
        %2040 = vmatpush1.bf16.msra.mxu0 0
        %2041 = vmatprep.subr.bf16.mxu0 0
        %2042 = vmatpush1.bf16.msra.mxu0 0
        %2043 = vmatprep.subr.bf16.mxu0 0
        %2044 = vmatpush1.bf16.msra.mxu0 0
        %2045 = vmatprep.subr.bf16.mxu0 0
        %2046 = vmatpush1.bf16.msra.mxu0 0
        %2047 = vmatprep.mubr.bf16.mxu0 0
        %2048 = vmatmul.mubr.bf16.gmra.mrb[0].mxu0 %v1782
        %v2049 = vpop.f32.mrb[0].mxu0
        %v2050 = vadd.f32 %v2010, %v2049
        %v2051 = vpop.f32.mrb[0].mxu0
        %v2052 = vpop.f32.mrb[0].mxu0
        %v2053 = vpop.f32.mrb[0].mxu0
        %2054 = vdwg.mxu0
        %v2055 = vadd.f32 %v1336, %v2050
        %2056 = vst [vmem:[%s434] sm:$0xff] %v2055
        %s2057 = sand.u32 %s193, 1
        %s2058 = scalar_lea.sflag [#allocation4], %s2057
        %s2059 = sand.u32 %s193, 1
        %s2060 = smul.addr %s2059, 8
        %s2061 = scalar_lea.vmem [#allocation14], %s2060
        %s2062 = sand.u32 %s33, 1
        %s2063 = scalar_lea.sflag [#allocation16], %s2062
        %s2064 = sand.u32 %s219, 1
        %s2065 = smul.addr %s2064, 8
        %s2066 = scalar_lea.vmem [#allocation15], %s2065
        %s2067 = sand.u32 %s33, 1
        %s2068 = scalar_lea.sflag [#allocation16], %s2067
        %s2069 = sand.u32 %s245, 1
        %s2070 = smul.addr %s2069, 8
        %s2071 = scalar_lea.vmem [#allocation17], %s2070
        // Predicated region
        $region77: #{tpu_custom_call.1} parent=47 // pred_check
          %p2072 = pneg %p203
        $region78: #{tpu_custom_call.1} parent=47 // pred_check_branch
          %2074 = sbr.rel (%p2072) target = $region80
        $region79: #{tpu_custom_call.1} parent=47 // pred_region
          %s2076 = ssub.s32 128, 128
          %2077 = vsyncadd %s2058, %s2076
          %s2078 = smul.addr %s33, 128
          %s2079 = scalar_lea.hbm %s7, %s2078
          %s2081 = sshll.u32 %s2061, 4
          %s2082 = int_to_ptr.vmem [resolvable:$true] %s2081
          %2084 = dma.vmem_to_hbm [thread:$0]  %s2082, 128, %s2079, %s2058
        $region80: #{tpu_custom_call.1} parent=47 // pred_fallthru
          _
        // Predicated region
        $region81: #{tpu_custom_call.1} parent=47 // pred_check
          %p2085 = pneg %p229
        $region82: #{tpu_custom_call.1} parent=47 // pred_check_branch
          %2087 = sbr.rel (%p2085) target = $region84
        $region83: #{tpu_custom_call.1} parent=47 // pred_region
          %s2089 = ssub.s32 128, 128
          %2090 = vsyncadd %s2063, %s2089
          %s2091 = smul.addr %s33, 128
          %s2092 = scalar_lea.hbm %s8, %s2091
          %s2094 = sshll.u32 %s2066, 4
          %s2095 = int_to_ptr.vmem [resolvable:$true] %s2094
          %2097 = dma.vmem_to_hbm [thread:$0]  %s2095, 128, %s2092, %s2063
        $region84: #{tpu_custom_call.1} parent=47 // pred_fallthru
          _
        // Predicated region
        $region85: #{tpu_custom_call.1} parent=47 // pred_check
          %p2098 = pneg %p255
        $region86: #{tpu_custom_call.1} parent=47 // pred_check_branch
          %2100 = sbr.rel (%p2098) target = $region88
        $region87: #{tpu_custom_call.1} parent=47 // pred_region
          %s2102 = ssub.s32 128, 128
          %2103 = vsyncadd %s2068, %s2102
          %s2104 = smul.addr %s33, 128
          %s2105 = scalar_lea.hbm %s9, %s2104
          %s2107 = sshll.u32 %s2071, 4
          %s2108 = int_to_ptr.vmem [resolvable:$true] %s2107
          %2110 = dma.vmem_to_hbm [thread:$0]  %s2108, 128, %s2105, %s2068
        $region88: #{tpu_custom_call.1} parent=47 // pred_fallthru
          _
      $region48: #{tpu_custom_call.1} parent=5 // pred_fallthru
        _
      %p2111 = scmp.le.s32.totalorder 2, %s28
      // Predicated region
      $region89: #{tpu_custom_call.1} parent=5 // pred_check
        %p2112 = pneg %p2111
      $region90: #{tpu_custom_call.1} parent=5 // pred_check_branch
        %2114 = sbr.rel (%p2112) target = $region92
      $region91: #{tpu_custom_call.1} parent=5 // pred_region
        %s2115 = ssub.s32 %s28, 2
        // Predicated region
        $region93: #{tpu_custom_call.1} parent=91 // pred_check
          %p2116 = pneg %p209
        $region94: #{tpu_custom_call.1} parent=91 // pred_check_branch
          %2118 = sbr.rel (%p2116) target = $region96
        $region95: #{tpu_custom_call.1} parent=91 // pred_region
          %s2119 = sand.u32 %s194, 1
          %s2120 = scalar_lea.sflag [#allocation4], %s2119
          %s2121 = sand.u32 %s194, 1
          %s2122 = smul.addr %s2121, 8
          %s2123 = scalar_lea.vmem [#allocation14], %s2122
          %2124 = dma.done %s2120, 128
        $region96: #{tpu_custom_call.1} parent=91 // pred_fallthru
          _
        // Predicated region
        $region97: #{tpu_custom_call.1} parent=91 // pred_check
          %p2125 = pneg %p235
        $region98: #{tpu_custom_call.1} parent=91 // pred_check_branch
          %2127 = sbr.rel (%p2125) target = $region100
        $region99: #{tpu_custom_call.1} parent=91 // pred_region
          %s2128 = sand.u32 %s34, 1
          %s2129 = scalar_lea.sflag [#allocation16], %s2128
          %s2130 = sand.u32 %s220, 1
          %s2131 = smul.addr %s2130, 8
          %s2132 = scalar_lea.vmem [#allocation15], %s2131
          %2133 = dma.done %s2129, 128
        $region100: #{tpu_custom_call.1} parent=91 // pred_fallthru
          _
        // Predicated region
        $region101: #{tpu_custom_call.1} parent=91 // pred_check
          %p2134 = pneg %p261
        $region102: #{tpu_custom_call.1} parent=91 // pred_check_branch
          %2136 = sbr.rel (%p2134) target = $region104
        $region103: #{tpu_custom_call.1} parent=91 // pred_region
          %s2137 = sand.u32 %s34, 1
          %s2138 = scalar_lea.sflag [#allocation16], %s2137
          %s2139 = sand.u32 %s246, 1
          %s2140 = smul.addr %s2139, 8
          %s2141 = scalar_lea.vmem [#allocation17], %s2140
          %2142 = dma.done %s2138, 128
        $region104: #{tpu_custom_call.1} parent=91 // pred_fallthru
          _
      $region92: #{tpu_custom_call.1} parent=5 // pred_fallthru
        _
    $region6: #{tpu_custom_call.1} parent=1 // loop_footer
      %s32 = sadd.s32 1, %s28
    $region7: #{tpu_custom_call.1} parent=1 // loop_footer_branch
      %27 = sbr.rel target = $region3
    $region8: #{tpu_custom_call.1} parent=1 // loop_exit
      _
    %2143 = vsyncpa [#allocation3], 1
    %s2144 = scalar_lea.sflag [#allocation3], 1
    %2145 = vsyncpa %s2144, 1
    %2146 = vsyncpa [#allocation6], 1
    %2147 = vsyncpa [#allocation9], 1
    %2148 = vsyncpa [#allocation12], 1
    %2149 = vsyncpa [#allocation4], 1
    %s2150 = scalar_lea.sflag [#allocation4], 1
    %2151 = vsyncpa %s2150, 1
    %2152 = vsyncpa [#allocation16], 1
    %s2153 = scalar_lea.sflag [#allocation16], 1
    %2154 = vsyncpa %s2153, 1

</llo_original>
